<compile_context>
chip_gen: v7x
topology: tpu7x:2x2x1
jax: 0.10.0
libtpu: 0.0.40
codegen_flags: <defaults>
</compile_context>

<pallas_src>
import math
from functools import partial

import jax
import jax.numpy as jnp
from jax import lax
from jax.experimental import pallas as pl
from jax.experimental.pallas import tpu as pltpu


def _pick_tile(dim, preferred):
    """Largest power-of-two tile <= preferred that divides dim, else the full dim."""
    for cand in (preferred, 1024, 512, 256, 128, 64, 32, 16, 8):
        if cand <= dim and dim % cand == 0:
            return cand
    return dim


# ----------------------------------------------------------------------------
# Kernel 1: fused QKV projection, writes output directly in head-major layout
#   x:(B,T,C)  w:(3*nh, C, hd)  b:(3*nh, 1, hd)  ->  qkv:(3*nh, B, T, hd)
# ----------------------------------------------------------------------------
def _qkv_proj_kernel(x_ref, w_ref, b_ref, o_ref):
    x = x_ref[0].astype(jnp.bfloat16)            # (tt, C)
    w = w_ref[0].astype(jnp.bfloat16)            # (C, hd)
    acc = jnp.dot(x, w, preferred_element_type=jnp.float32)   # (tt, hd) f32
    acc = acc + b_ref[0]                         # (1, hd) broadcast
    o_ref[0, 0] = acc.astype(o_ref.dtype)


def pallas_qkv_proj(x, w_qkv, b_qkv, n_head, hd, block_t):
    B, T, C = x.shape
    tt = _pick_tile(T, block_t)
    return pl.pallas_call(
        _qkv_proj_kernel,
        out_shape=jax.ShapeDtypeStruct((3 * n_head, B, T, hd), x.dtype),
        grid=(B, T // tt, 3 * n_head),
        in_specs=[
            # x block is reused across the innermost (head, qkv) axis.
            pl.BlockSpec((1, tt, C), lambda b, i, j: (b, i, 0)),
            pl.BlockSpec((1, C, hd), lambda b, i, j: (j, 0, 0)),
            pl.BlockSpec((1, 1, hd), lambda b, i, j: (j, 0, 0)),
        ],
        out_specs=pl.BlockSpec((1, 1, tt, hd), lambda b, i, j: (j, b, i, 0)),
        compiler_params=pltpu.CompilerParams(
            dimension_semantics=("parallel", "parallel", "arbitrary")),
    )(x, w_qkv, b_qkv)


# ----------------------------------------------------------------------------
# Kernel 2: flash-style causal attention with online softmax
#   qkv:(3*nh, B, T, hd) (passed three times with head offsets) -> y:(nh, B, T, hd)
# ----------------------------------------------------------------------------
def _flash_attn_kernel(q_ref, k_ref, v_ref, o_ref, m_sc, l_sc, acc_sc, *, scale):
    tq = q_ref.shape[2]
    tkv = k_ref.shape[2]
    qi = pl.program_id(2)
    ki = pl.program_id(3)

    @pl.when(ki == 0)
    def _init():
        # Large-finite init (not -inf) so fully-masked/padded rows never NaN.
        m_sc[...] = jnp.full_like(m_sc, -1e30)
        l_sc[...] = jnp.zeros_like(l_sc)
        acc_sc[...] = jnp.zeros_like(acc_sc)

    # Skip kv blocks strictly above the causal diagonal (~50% of score FLOPs).
    @pl.when(ki * tkv <= qi * tq + (tq - 1))
    def _compute():
        # Pre-scale q (tq*hd multiplies instead of tq*tkv), then cast for MXU.
        q = (q_ref[0, 0] * scale).astype(jnp.bfloat16)       # (tq, hd)
        k = k_ref[0, 0].astype(jnp.bfloat16)                 # (tkv, hd)
        v = v_ref[0, 0].astype(jnp.bfloat16)                 # (tkv, hd)

        # Contract on head_dim directly -> no k.T relayout on the XLU.
        s = lax.dot_general(q, k, (((1,), (1,)), ((), ())),
                            preferred_element_type=jnp.float32)  # (tq, tkv)

        # Per-tile causal mask from block-offset iotas; large-negative, not -inf.
        row = qi * tq + lax.broadcasted_iota(jnp.int32, (tq, tkv), 0)
        col = ki * tkv + lax.broadcasted_iota(jnp.int32, (tq, tkv), 1)
        s = jnp.where(col <= row, s, -1e30)

        m_prev = m_sc[...]                                    # (tq, 1)
        m_new = jnp.maximum(m_prev, jnp.max(s, axis=-1, keepdims=True))
        alpha = jnp.exp(m_prev - m_new)
        p = jnp.exp(s - m_new)                                # (tq, tkv)
        l_sc[...] = alpha * l_sc[...] + jnp.sum(p, axis=-1, keepdims=True)
        acc_sc[...] = alpha * acc_sc[...] + jnp.dot(
            p.astype(jnp.bfloat16), v, preferred_element_type=jnp.float32)
        m_sc[...] = m_new

    @pl.when(ki == pl.num_programs(3) - 1)
    def _finalize():
        inv = pl.reciprocal(l_sc[...], approx=True)           # EUP, ~free
        o_ref[0, 0] = (acc_sc[...] * inv).astype(o_ref.dtype)


def pallas_flash_attention(qkv_heads, n_head, B, T, hd, block_q, block_kv):
    tq = _pick_tile(T, block_q)
    tkv = _pick_tile(T, block_kv)
    scale = 1.0 / math.sqrt(hd)
    kernel = partial(_flash_attn_kernel, scale=scale)
    return pl.pallas_call(
        kernel,
        out_shape=jax.ShapeDtypeStruct((n_head, B, T, hd), qkv_heads.dtype),
        grid=(B, n_head, T // tq, T // tkv),
        in_specs=[
            pl.BlockSpec((1, 1, tq, hd),
                         lambda b, h, qi, ki: (h, b, qi, 0)),
            pl.BlockSpec((1, 1, tkv, hd),
                         lambda b, h, qi, ki: (n_head + h, b, ki, 0)),
            pl.BlockSpec((1, 1, tkv, hd),
                         lambda b, h, qi, ki: (2 * n_head + h, b, ki, 0)),
        ],
        out_specs=pl.BlockSpec((1, 1, tq, hd),
                               lambda b, h, qi, ki: (h, b, qi, 0)),
        scratch_shapes=[
            pltpu.VMEM((tq, 1), jnp.float32),    # running max m
            pltpu.VMEM((tq, 1), jnp.float32),    # running denom l
            pltpu.VMEM((tq, hd), jnp.float32),   # f32 accumulator
        ],
        compiler_params=pltpu.CompilerParams(
            dimension_semantics=("parallel", "parallel", "parallel", "arbitrary")),
    )(qkv_heads, qkv_heads, qkv_heads)


# ----------------------------------------------------------------------------
# Kernel 3: output projection, reduces over heads; consumes head-major y directly
#   y:(nh, B, T, hd)  w:(nh, hd, C)  b:(1, C)  ->  out:(B, T, C)
# ----------------------------------------------------------------------------
def _out_proj_kernel(y_ref, w_ref, b_ref, o_ref, acc_sc):
    h = pl.program_id(3)

    @pl.when(h == 0)
    def _init():
        acc_sc[...] = jnp.zeros_like(acc_sc)

    y = y_ref[0, 0].astype(jnp.bfloat16)         # (tt, hd)
    w = w_ref[0].astype(jnp.bfloat16)            # (hd, tn)
    acc_sc[...] += jnp.dot(y, w, preferred_element_type=jnp.float32)

    @pl.when(h == pl.num_programs(3) - 1)
    def _finalize():
        # Bias added exactly once, on the last reduction step.
        o_ref[0] = (acc_sc[...] + b_ref[...]).astype(o_ref.dtype)


def pallas_out_proj(y_heads, w_out, b_out, n_head, B, T, C, hd, block_t, block_n):
    tt = _pick_tile(T, block_t)
    tn = _pick_tile(C, block_n)
    return pl.pallas_call(
        _out_proj_kernel,
        out_shape=jax.ShapeDtypeStruct((B, T, C), y_heads.dtype),
        grid=(B, T // tt, C // tn, n_head),
        in_specs=[
            pl.BlockSpec((1, 1, tt, hd), lambda b, i, j, h: (h, b, i, 0)),
            pl.BlockSpec((1, hd, tn), lambda b, i, j, h: (h, 0, j)),
            pl.BlockSpec((1, tn), lambda b, i, j, h: (0, j)),
        ],
        out_specs=pl.BlockSpec((1, tt, tn), lambda b, i, j, h: (b, i, j)),
        scratch_shapes=[pltpu.VMEM((tt, tn), jnp.float32)],
        compiler_params=pltpu.CompilerParams(
            dimension_semantics=("parallel", "parallel", "parallel", "arbitrary")),
    )(y_heads, w_out, b_out)


# ----------------------------------------------------------------------------
# Full module forward
# ----------------------------------------------------------------------------
def causal_self_attention(x, params, n_head,
                          block_t=256, block_n=256, block_q=256, block_kv=256):
    """x: (B, T, C).  Matches nanoGPT CausalSelfAttention.forward (eval mode)."""
    B, T, C = x.shape
    assert C % n_head == 0
    hd = C // n_head

    # One-time weight re-layouts (O(params), negligible vs activation traffic).
    # w_attn:(C,3C) -> (3*nh, C, hd); column s*C + h*hd + d maps to [s*nh+h, :, d]
    w_qkv = (params["w_attn"].reshape(C, 3, n_head, hd)
             .transpose(1, 2, 0, 3).reshape(3 * n_head, C, hd))
    b_qkv = params["b_attn"].reshape(3 * n_head, 1, hd)
    # w_proj:(C,C) rows indexed by (head, hd) -> (nh, hd, C)
    w_out = params["w_proj"].reshape(n_head, hd, C)
    b_out = params["b_proj"].reshape(1, C)

    # 1) QKV projection, head-major output: (3*nh, B, T, hd)
    qkv_heads = pallas_qkv_proj(x, w_qkv, b_qkv, n_head, hd, block_t)

    # 2) flash attention (causal), output (nh, B, T, hd)
    y_heads = pallas_flash_attention(qkv_heads, n_head, B, T, hd, block_q, block_kv)

    # 3) output projection, reduce over heads -> (B, T, C)
    return pallas_out_proj(y_heads, w_out, b_out, n_head, B, T, C, hd,
                           block_t, block_n)


# ----------------------------------------------------------------------------
# Pure-JAX f32 reference (mirrors the PyTorch math) for a sanity check
# ----------------------------------------------------------------------------
def reference(x, params, n_head):
    B, T, C = x.shape
    hd = C // n_head
    qkv = x @ params["w_attn"] + params["b_attn"]
    q, k, v = jnp.split(qkv, 3, axis=2)
    q = q.reshape(B, T, n_head, hd).transpose(0, 2, 1, 3)
    k = k.reshape(B, T, n_head, hd).transpose(0, 2, 1, 3)
    v = v.reshape(B, T, n_head, hd).transpose(0, 2, 1, 3)
    att = (q @ jnp.swapaxes(k, -2, -1)) / math.sqrt(hd)
    mask = jnp.tril(jnp.ones((T, T), dtype=bool))
    att = jnp.where(mask[None, None], att, -jnp.inf)
    att = jax.nn.softmax(att, axis=-1)
    y = att @ v
    y = y.transpose(0, 2, 1, 3).reshape(B, T, C)
    return y @ params["w_proj"] + params["b_proj"]


if __name__ == "__main__":
    # Small config consistent with the module: n_embd=32, n_head=4, seq=8.
    B, T, C, n_head = 2, 8, 32, 4
    key = jax.random.PRNGKey(0)
    kx, k1, k2, k3, k4 = jax.random.split(key, 5)

    x = jax.random.normal(kx, (B, T, C), dtype=jnp.float32)

    # Linear weights stored transposed: (in, out), like W.T of nn.Linear.
    params = {
        "w_attn": jax.random.normal(k1, (C, 3 * C), dtype=jnp.float32) * 0.02,
        "b_attn": jax.random.normal(k2, (3 * C,), dtype=jnp.float32) * 0.02,
        "w_proj": jax.random.normal(k3, (C, C), dtype=jnp.float32) * 0.02,
        "b_proj": jax.random.normal(k4, (C,), dtype=jnp.float32) * 0.02,
    }

    fwd = jax.jit(partial(causal_self_attention, n_head=n_head))
    y = fwd(x, params)
    jax.block_until_ready(y)

    y_ref = reference(x, params, n_head)
    assert y.shape == (B, T, C)
    err = float(jnp.max(jnp.abs(y - y_ref)))
    # bf16 MXU inputs (f32 accumulation) vs pure-f32 reference -> small tolerance.
    assert jnp.allclose(y, y_ref, atol=5e-3, rtol=5e-2), f"mismatch vs ref: {err}"

    print("KERNEL_OK")
</pallas_src>

<mosaic_0001>
module attributes {stable_mosaic.version = 11 : i64} {
  func.func @_qkv_proj_kernel(%arg0: i32, %arg1: i32, %arg2: i32, %arg3: memref<1x8x32xf32, #tpu.memory_space<vmem>>, %arg4: memref<1x32x8xf32, #tpu.memory_space<vmem>>, %arg5: memref<1x1x8xf32, #tpu.memory_space<vmem>>, %arg6: memref<1x1x8x8xf32, #tpu.memory_space<vmem>>) attributes {dimension_semantics = [#tpu.dimension_semantics<parallel>, #tpu.dimension_semantics<parallel>, #tpu.dimension_semantics<arbitrary>], iteration_bounds = array<i64: 2, 1, 12>, scalar_prefetch = 0 : i64, scratch_operands = 0 : i64, tpu.core_type = #tpu.core_type<tc>, window_params = [{transform_indices = @transform_0, window_bounds = array<i64: 1, 8, 32>}, {transform_indices = @transform_1, window_bounds = array<i64: 1, 32, 8>}, {transform_indices = @transform_2, window_bounds = array<i64: 1, 1, 8>}, {transform_indices = @transform_3, window_bounds = array<i64: 1, 1, 8, 8>}]} {
    %c0 = arith.constant 0 : index
    %c0_0 = arith.constant 0 : index
    %c0_1 = arith.constant 0 : index
    %0 = vector.load %arg3[%c0, %c0_0, %c0_1] : memref<1x8x32xf32, #tpu.memory_space<vmem>>, vector<1x8x32xf32>
    %1 = vector.shape_cast %0 : vector<1x8x32xf32> to vector<8x32xf32>
    %2 = arith.truncf %1 : vector<8x32xf32> to vector<8x32xbf16>
    %c0_2 = arith.constant 0 : index
    %c0_3 = arith.constant 0 : index
    %c0_4 = arith.constant 0 : index
    %3 = vector.load %arg4[%c0_2, %c0_3, %c0_4] : memref<1x32x8xf32, #tpu.memory_space<vmem>>, vector<1x32x8xf32>
    %4 = vector.shape_cast %3 : vector<1x32x8xf32> to vector<32x8xf32>
    %5 = arith.truncf %4 : vector<32x8xf32> to vector<32x8xbf16>
    %cst = arith.constant dense<0.000000e+00> : vector<8x8xf32>
    %6 = tpu.matmul %2, %5, %cst {dimension_numbers = #tpu.dot_dimension_numbers<[1], [0], [0], [1], [0, 0, 1, 1], [], []>} : vector<8x32xbf16>, vector<32x8xbf16>, vector<8x8xf32> -> vector<8x8xf32>
    %c0_5 = arith.constant 0 : index
    %c0_6 = arith.constant 0 : index
    %c0_7 = arith.constant 0 : index
    %7 = vector.load %arg5[%c0_5, %c0_6, %c0_7] : memref<1x1x8xf32, #tpu.memory_space<vmem>>, vector<1x1x8xf32>
    %8 = vector.shape_cast %7 : vector<1x1x8xf32> to vector<1x8xf32>
    %9 = vector.broadcast %8 : vector<1x8xf32> to vector<8x8xf32>
    %10 = arith.addf %6, %9 : vector<8x8xf32>
    %c0_8 = arith.constant 0 : index
    %c0_9 = arith.constant 0 : index
    %c0_10 = arith.constant 0 : index
    %c0_11 = arith.constant 0 : index
    %11 = vector.load %arg6[%c0_8, %c0_9, %c0_10, %c0_11] : memref<1x1x8x8xf32, #tpu.memory_space<vmem>>, vector<1x1x8x8xf32>
    %12 = vector.shape_cast %11 : vector<1x1x8x8xf32> to vector<8x8xf32>
    %13 = vector.shape_cast %10 : vector<8x8xf32> to vector<1x1x8x8xf32>
    tpu.vector_store %arg6[%c0_8, %c0_9, %c0_10, %c0_11], %13 {strides = array<i32>} : memref<1x1x8x8xf32, #tpu.memory_space<vmem>>, vector<1x1x8x8xf32>,
    return
  }
  func.func @transform_0(%arg0: i32, %arg1: i32, %arg2: i32) -> (i32, i32, i32) {
    %c0_i32 = arith.constant 0 : i32
    %c0_i32_0 = arith.constant 0 : i32
    return %arg0, %arg1, %c0_i32 : i32, i32, i32
  }
  func.func @transform_1(%arg0: i32, %arg1: i32, %arg2: i32) -> (i32, i32, i32) {
    %c0_i32 = arith.constant 0 : i32
    %c0_i32_0 = arith.constant 0 : i32
    %c0_i32_1 = arith.constant 0 : i32
    return %arg2, %c0_i32, %c0_i32_0 : i32, i32, i32
  }
  func.func @transform_2(%arg0: i32, %arg1: i32, %arg2: i32) -> (i32, i32, i32) {
    %c0_i32 = arith.constant 0 : i32
    %c0_i32_0 = arith.constant 0 : i32
    %c0_i32_1 = arith.constant 0 : i32
    return %arg2, %c0_i32, %c0_i32_0 : i32, i32, i32
  }
  func.func @transform_3(%arg0: i32, %arg1: i32, %arg2: i32) -> (i32, i32, i32, i32) {
    %c0_i32 = arith.constant 0 : i32
    %c0_i32_0 = arith.constant 0 : i32
    return %arg2, %arg0, %arg1, %c0_i32 : i32, i32, i32, i32
  }
}

module attributes {stable_mosaic.version = 11 : i64} {
  func.func @_out_proj_kernel(%arg0: i32, %arg1: i32, %arg2: i32, %arg3: i32, %arg4: memref<1x1x8x8xf32, #tpu.memory_space<vmem>>, %arg5: memref<1x8x32xf32, #tpu.memory_space<vmem>>, %arg6: memref<1x32xf32, #tpu.memory_space<vmem>>, %arg7: memref<1x8x32xf32, #tpu.memory_space<vmem>>, %arg8: memref<8x32xf32, #tpu.memory_space<vmem>>) attributes {dimension_semantics = [#tpu.dimension_semantics<parallel>, #tpu.dimension_semantics<parallel>, #tpu.dimension_semantics<parallel>, #tpu.dimension_semantics<arbitrary>], iteration_bounds = array<i64: 2, 1, 1, 4>, scalar_prefetch = 0 : i64, scratch_operands = 1 : i64, tpu.core_type = #tpu.core_type<tc>, window_params = [{transform_indices = @transform_0, window_bounds = array<i64: 1, 1, 8, 8>}, {transform_indices = @transform_1, window_bounds = array<i64: 1, 8, 32>}, {transform_indices = @transform_2, window_bounds = array<i64: 1, 32>}, {transform_indices = @transform_3, window_bounds = array<i64: 1, 8, 32>}]} {
    %c0_i32 = arith.constant 0 : i32
    %0 = arith.cmpi eq, %arg3, %c0_i32 : i32
    %1 = arith.extui %0 : i1 to i32
    %c0_i32_0 = arith.constant 0 : i32
    %2 = arith.cmpi ne, %1, %c0_i32_0 : i32
    scf.if %2 {
      %cst_12 = arith.constant 0.000000e+00 : f32
      %16 = vector.broadcast %cst_12 : f32 to vector<8x32xf32>
      %c0_13 = arith.constant 0 : index
      %c0_14 = arith.constant 0 : index
      %17 = vector.load %arg8[%c0_13, %c0_14] : memref<8x32xf32, #tpu.memory_space<vmem>>, vector<8x32xf32>
      tpu.vector_store %arg8[%c0_13, %c0_14], %16 {strides = array<i32>} : memref<8x32xf32, #tpu.memory_space<vmem>>, vector<8x32xf32>,
    } else {
    }
    %c0 = arith.constant 0 : index
    %c0_1 = arith.constant 0 : index
    %c0_2 = arith.constant 0 : index
    %c0_3 = arith.constant 0 : index
    %3 = vector.load %arg4[%c0, %c0_1, %c0_2, %c0_3] : memref<1x1x8x8xf32, #tpu.memory_space<vmem>>, vector<1x1x8x8xf32>
    %4 = vector.shape_cast %3 : vector<1x1x8x8xf32> to vector<8x8xf32>
    %5 = arith.truncf %4 : vector<8x8xf32> to vector<8x8xbf16>
    %c0_4 = arith.constant 0 : index
    %c0_5 = arith.constant 0 : index
    %c0_6 = arith.constant 0 : index
    %6 = vector.load %arg5[%c0_4, %c0_5, %c0_6] : memref<1x8x32xf32, #tpu.memory_space<vmem>>, vector<1x8x32xf32>
    %7 = vector.shape_cast %6 : vector<1x8x32xf32> to vector<8x32xf32>
    %8 = arith.truncf %7 : vector<8x32xf32> to vector<8x32xbf16>
    %c0_7 = arith.constant 0 : index
    %c0_8 = arith.constant 0 : index
    %9 = vector.load %arg8[%c0_7, %c0_8] : memref<8x32xf32, #tpu.memory_space<vmem>>, vector<8x32xf32>
    %cst = arith.constant dense<0.000000e+00> : vector<8x32xf32>
    %10 = tpu.matmul %5, %8, %cst {dimension_numbers = #tpu.dot_dimension_numbers<[1], [0], [0], [1], [0, 0, 1, 1], [], []>} : vector<8x8xbf16>, vector<8x32xbf16>, vector<8x32xf32> -> vector<8x32xf32>
    %11 = arith.addf %9, %10 : vector<8x32xf32>
    %c0_9 = arith.constant 0 : index
    %c0_10 = arith.constant 0 : index
    %12 = vector.load %arg8[%c0_9, %c0_10] : memref<8x32xf32, #tpu.memory_space<vmem>>, vector<8x32xf32>
    tpu.vector_store %arg8[%c0_9, %c0_10], %11 {strides = array<i32>} : memref<8x32xf32, #tpu.memory_space<vmem>>, vector<8x32xf32>,
    %c3_i32 = arith.constant 3 : i32
    %13 = arith.cmpi eq, %arg3, %c3_i32 : i32
    %14 = arith.extui %13 : i1 to i32
    %c0_i32_11 = arith.constant 0 : i32
    %15 = arith.cmpi ne, %14, %c0_i32_11 : i32
    scf.if %15 {
      %c0_12 = arith.constant 0 : index
      %c0_13 = arith.constant 0 : index
      %16 = vector.load %arg8[%c0_12, %c0_13] : memref<8x32xf32, #tpu.memory_space<vmem>>, vector<8x32xf32>
      %c0_14 = arith.constant 0 : index
      %c0_15 = arith.constant 0 : index
      %17 = vector.load %arg6[%c0_14, %c0_15] : memref<1x32xf32, #tpu.memory_space<vmem>>, vector<1x32xf32>
      %18 = vector.broadcast %17 : vector<1x32xf32> to vector<8x32xf32>
      %19 = arith.addf %16, %18 : vector<8x32xf32>
      %c0_16 = arith.constant 0 : index
      %c0_17 = arith.constant 0 : index
      %c0_18 = arith.constant 0 : index
      %20 = vector.load %arg7[%c0_16, %c0_17, %c0_18] : memref<1x8x32xf32, #tpu.memory_space<vmem>>, vector<1x8x32xf32>
      %21 = vector.shape_cast %20 : vector<1x8x32xf32> to vector<8x32xf32>
      %22 = vector.shape_cast %19 : vector<8x32xf32> to vector<1x8x32xf32>
      tpu.vector_store %arg7[%c0_16, %c0_17, %c0_18], %22 {strides = array<i32>} : memref<1x8x32xf32, #tpu.memory_space<vmem>>, vector<1x8x32xf32>,
    } else {
    }
    return
  }
  func.func @transform_0(%arg0: i32, %arg1: i32, %arg2: i32, %arg3: i32) -> (i32, i32, i32, i32) {
    %c0_i32 = arith.constant 0 : i32
    %c0_i32_0 = arith.constant 0 : i32
    return %arg3, %arg0, %arg1, %c0_i32 : i32, i32, i32, i32
  }
  func.func @transform_1(%arg0: i32, %arg1: i32, %arg2: i32, %arg3: i32) -> (i32, i32, i32) {
    %c0_i32 = arith.constant 0 : i32
    %c0_i32_0 = arith.constant 0 : i32
    return %arg3, %c0_i32, %arg2 : i32, i32, i32
  }
  func.func @transform_2(%arg0: i32, %arg1: i32, %arg2: i32, %arg3: i32) -> (i32, i32) {
    %c0_i32 = arith.constant 0 : i32
    %c0_i32_0 = arith.constant 0 : i32
    return %c0_i32, %arg2 : i32, i32
  }
  func.func @transform_3(%arg0: i32, %arg1: i32, %arg2: i32, %arg3: i32) -> (i32, i32, i32) {
    %c0_i32 = arith.constant 0 : i32
    return %arg0, %arg1, %arg2 : i32, i32, i32
  }
}

module attributes {stable_mosaic.version = 11 : i64} {
  func.func @_flash_attn_kernel(%arg0: i32, %arg1: i32, %arg2: i32, %arg3: i32, %arg4: memref<1x1x8x8xf32, #tpu.memory_space<vmem>>, %arg5: memref<1x1x8x8xf32, #tpu.memory_space<vmem>>, %arg6: memref<1x1x8x8xf32, #tpu.memory_space<vmem>>, %arg7: memref<1x1x8x8xf32, #tpu.memory_space<vmem>>, %arg8: memref<8x1xf32, #tpu.memory_space<vmem>>, %arg9: memref<8x1xf32, #tpu.memory_space<vmem>>, %arg10: memref<8x8xf32, #tpu.memory_space<vmem>>) attributes {dimension_semantics = [#tpu.dimension_semantics<parallel>, #tpu.dimension_semantics<parallel>, #tpu.dimension_semantics<parallel>, #tpu.dimension_semantics<arbitrary>], iteration_bounds = array<i64: 2, 4, 1, 1>, scalar_prefetch = 0 : i64, scratch_operands = 3 : i64, tpu.core_type = #tpu.core_type<tc>, window_params = [{transform_indices = @transform_0, window_bounds = array<i64: 1, 1, 8, 8>}, {transform_indices = @transform_1, window_bounds = array<i64: 1, 1, 8, 8>}, {transform_indices = @transform_2, window_bounds = array<i64: 1, 1, 8, 8>}, {transform_indices = @transform_3, window_bounds = array<i64: 1, 1, 8, 8>}]} {
    %c0_i32 = arith.constant 0 : i32
    %0 = arith.cmpi eq, %arg3, %c0_i32 : i32
    %1 = arith.extui %0 : i1 to i32
    %c0_i32_0 = arith.constant 0 : i32
    %2 = arith.cmpi ne, %1, %c0_i32_0 : i32
    scf.if %2 {
      %cst = arith.constant -1.000000e+30 : f32
      %12 = vector.broadcast %cst : f32 to vector<8x1xf32>
      %c0 = arith.constant 0 : index
      %c0_5 = arith.constant 0 : index
      %13 = vector.load %arg8[%c0, %c0_5] : memref<8x1xf32, #tpu.memory_space<vmem>>, vector<8x1xf32>
      tpu.vector_store %arg8[%c0, %c0_5], %12 {strides = array<i32>} : memref<8x1xf32, #tpu.memory_space<vmem>>, vector<8x1xf32>,
      %cst_6 = arith.constant 0.000000e+00 : f32
      %14 = vector.broadcast %cst_6 : f32 to vector<8x1xf32>
      %c0_7 = arith.constant 0 : index
      %c0_8 = arith.constant 0 : index
      %15 = vector.load %arg9[%c0_7, %c0_8] : memref<8x1xf32, #tpu.memory_space<vmem>>, vector<8x1xf32>
      tpu.vector_store %arg9[%c0_7, %c0_8], %14 {strides = array<i32>} : memref<8x1xf32, #tpu.memory_space<vmem>>, vector<8x1xf32>,
      %cst_9 = arith.constant 0.000000e+00 : f32
      %16 = vector.broadcast %cst_9 : f32 to vector<8x8xf32>
      %c0_10 = arith.constant 0 : index
      %c0_11 = arith.constant 0 : index
      %17 = vector.load %arg10[%c0_10, %c0_11] : memref<8x8xf32, #tpu.memory_space<vmem>>, vector<8x8xf32>
      tpu.vector_store %arg10[%c0_10, %c0_11], %16 {strides = array<i32>} : memref<8x8xf32, #tpu.memory_space<vmem>>, vector<8x8xf32>,
    } else {
    }
    %c8_i32 = arith.constant 8 : i32
    %3 = arith.muli %arg3, %c8_i32 : i32
    %c8_i32_1 = arith.constant 8 : i32
    %4 = arith.muli %arg2, %c8_i32_1 : i32
    %c7_i32 = arith.constant 7 : i32
    %5 = arith.addi %4, %c7_i32 : i32
    %6 = arith.cmpi sle, %3, %5 : i32
    %7 = arith.extui %6 : i1 to i32
    %c0_i32_2 = arith.constant 0 : i32
    %8 = arith.cmpi ne, %7, %c0_i32_2 : i32
    scf.if %8 {
      %c0 = arith.constant 0 : index
      %c0_5 = arith.constant 0 : index
      %c0_6 = arith.constant 0 : index
      %c0_7 = arith.constant 0 : index
      %12 = vector.load %arg4[%c0, %c0_5, %c0_6, %c0_7] : memref<1x1x8x8xf32, #tpu.memory_space<vmem>>, vector<1x1x8x8xf32>
      %13 = vector.shape_cast %12 : vector<1x1x8x8xf32> to vector<8x8xf32>
      %cst = arith.constant 0.353553385 : f32
      %14 = vector.broadcast %cst : f32 to vector<8x8xf32>
      %15 = arith.mulf %13, %14 : vector<8x8xf32>
      %16 = arith.truncf %15 : vector<8x8xf32> to vector<8x8xbf16>
      %c0_8 = arith.constant 0 : index
      %c0_9 = arith.constant 0 : index
      %c0_10 = arith.constant 0 : index
      %c0_11 = arith.constant 0 : index
      %17 = vector.load %arg5[%c0_8, %c0_9, %c0_10, %c0_11] : memref<1x1x8x8xf32, #tpu.memory_space<vmem>>, vector<1x1x8x8xf32>
      %18 = vector.shape_cast %17 : vector<1x1x8x8xf32> to vector<8x8xf32>
      %19 = arith.truncf %18 : vector<8x8xf32> to vector<8x8xbf16>
      %c0_12 = arith.constant 0 : index
      %c0_13 = arith.constant 0 : index
      %c0_14 = arith.constant 0 : index
      %c0_15 = arith.constant 0 : index
      %20 = vector.load %arg6[%c0_12, %c0_13, %c0_14, %c0_15] : memref<1x1x8x8xf32, #tpu.memory_space<vmem>>, vector<1x1x8x8xf32>
      %21 = vector.shape_cast %20 : vector<1x1x8x8xf32> to vector<8x8xf32>
      %22 = arith.truncf %21 : vector<8x8xf32> to vector<8x8xbf16>
      %cst_16 = arith.constant dense<0.000000e+00> : vector<8x8xf32>
      %23 = tpu.matmul %16, %19, %cst_16 {dimension_numbers = #tpu.dot_dimension_numbers<[1], [1], [0], [0], [0, 0, 1, 0], [], []>} : vector<8x8xbf16>, vector<8x8xbf16>, vector<8x8xf32> -> vector<8x8xf32>
      %c8_i32_17 = arith.constant 8 : i32
      %24 = arith.muli %arg2, %c8_i32_17 : i32
      %25 = tpu.iota {dimensions = array<i32: 0>} : vector<8x8xi32>
      %26 = vector.broadcast %24 : i32 to vector<8x8xi32>
      %27 = arith.addi %26, %25 : vector<8x8xi32>
      %c8_i32_18 = arith.constant 8 : i32
      %28 = arith.muli %arg3, %c8_i32_18 : i32
      %29 = tpu.iota {dimensions = array<i32: 1>} : vector<8x8xi32>
      %30 = vector.broadcast %28 : i32 to vector<8x8xi32>
      %31 = arith.addi %30, %29 : vector<8x8xi32>
      %32 = arith.cmpi sle, %31, %27 : vector<8x8xi32>
      %cst_19 = arith.constant -1.000000e+30 : f32
      %33 = vector.broadcast %cst_19 : f32 to vector<8x8xf32>
      %34 = arith.select %32, %23, %33 : vector<8x8xi1>, vector<8x8xf32>
      %c0_20 = arith.constant 0 : index
      %c0_21 = arith.constant 0 : index
      %35 = vector.load %arg8[%c0_20, %c0_21] : memref<8x1xf32, #tpu.memory_space<vmem>>, vector<8x1xf32>
      %cst_22 = arith.constant dense<0xFF800000> : vector<8xf32>
      %36 = vector.multi_reduction <maximumf>, %34, %cst_22 [1] : vector<8x8xf32> to vector<8xf32>
      %37 = vector.shape_cast %36 : vector<8xf32> to vector<8x1xf32>
      %38 = arith.maximumf %35, %37 : vector<8x1xf32>
      %39 = arith.subf %35, %38 : vector<8x1xf32>
      %40 = math.exp %39 : vector<8x1xf32>
      %41 = vector.broadcast %38 : vector<8x1xf32> to vector<8x8xf32>
      %42 = arith.subf %34, %41 : vector<8x8xf32>
      %43 = math.exp %42 : vector<8x8xf32>
      %c0_23 = arith.constant 0 : index
      %c0_24 = arith.constant 0 : index
      %44 = vector.load %arg9[%c0_23, %c0_24] : memref<8x1xf32, #tpu.memory_space<vmem>>, vector<8x1xf32>
      %45 = arith.mulf %40, %44 : vector<8x1xf32>
      %cst_25 = arith.constant dense<0.000000e+00> : vector<8xf32>
      %46 = vector.multi_reduction <add>, %43, %cst_25 [1] : vector<8x8xf32> to vector<8xf32>
      %47 = vector.shape_cast %46 : vector<8xf32> to vector<8x1xf32>
      %48 = arith.addf %45, %47 : vector<8x1xf32>
      %c0_26 = arith.constant 0 : index
      %c0_27 = arith.constant 0 : index
      %49 = vector.load %arg9[%c0_26, %c0_27] : memref<8x1xf32, #tpu.memory_space<vmem>>, vector<8x1xf32>
      tpu.vector_store %arg9[%c0_26, %c0_27], %48 {strides = array<i32>} : memref<8x1xf32, #tpu.memory_space<vmem>>, vector<8x1xf32>,
      %c0_28 = arith.constant 0 : index
      %c0_29 = arith.constant 0 : index
      %50 = vector.load %arg10[%c0_28, %c0_29] : memref<8x8xf32, #tpu.memory_space<vmem>>, vector<8x8xf32>
      %51 = vector.broadcast %40 : vector<8x1xf32> to vector<8x8xf32>
      %52 = arith.mulf %51, %50 : vector<8x8xf32>
      %53 = arith.truncf %43 : vector<8x8xf32> to vector<8x8xbf16>
      %cst_30 = arith.constant dense<0.000000e+00> : vector<8x8xf32>
      %54 = tpu.matmul %53, %22, %cst_30 {dimension_numbers = #tpu.dot_dimension_numbers<[1], [0], [0], [1], [0, 0, 1, 1], [], []>} : vector<8x8xbf16>, vector<8x8xbf16>, vector<8x8xf32> -> vector<8x8xf32>
      %55 = arith.addf %52, %54 : vector<8x8xf32>
      %c0_31 = arith.constant 0 : index
      %c0_32 = arith.constant 0 : index
      %56 = vector.load %arg10[%c0_31, %c0_32] : memref<8x8xf32, #tpu.memory_space<vmem>>, vector<8x8xf32>
      tpu.vector_store %arg10[%c0_31, %c0_32], %55 {strides = array<i32>} : memref<8x8xf32, #tpu.memory_space<vmem>>, vector<8x8xf32>,
      %c0_33 = arith.constant 0 : index
      %c0_34 = arith.constant 0 : index
      %57 = vector.load %arg8[%c0_33, %c0_34] : memref<8x1xf32, #tpu.memory_space<vmem>>, vector<8x1xf32>
      tpu.vector_store %arg8[%c0_33, %c0_34], %38 {strides = array<i32>} : memref<8x1xf32, #tpu.memory_space<vmem>>, vector<8x1xf32>,
    } else {
    }
    %c0_i32_3 = arith.constant 0 : i32
    %9 = arith.cmpi eq, %arg3, %c0_i32_3 : i32
    %10 = arith.extui %9 : i1 to i32
    %c0_i32_4 = arith.constant 0 : i32
    %11 = arith.cmpi ne, %10, %c0_i32_4 : i32
    scf.if %11 {
      %c0 = arith.constant 0 : index
      %c0_5 = arith.constant 0 : index
      %12 = vector.load %arg9[%c0, %c0_5] : memref<8x1xf32, #tpu.memory_space<vmem>>, vector<8x1xf32>
      %13 = tpu.reciprocal %12 {approx = true} : vector<8x1xf32> -> vector<8x1xf32>
      %c0_6 = arith.constant 0 : index
      %c0_7 = arith.constant 0 : index
      %14 = vector.load %arg10[%c0_6, %c0_7] : memref<8x8xf32, #tpu.memory_space<vmem>>, vector<8x8xf32>
      %15 = vector.broadcast %13 : vector<8x1xf32> to vector<8x8xf32>
      %16 = arith.mulf %14, %15 : vector<8x8xf32>
      %c0_8 = arith.constant 0 : index
      %c0_9 = arith.constant 0 : index
      %c0_10 = arith.constant 0 : index
      %c0_11 = arith.constant 0 : index
      %17 = vector.load %arg7[%c0_8, %c0_9, %c0_10, %c0_11] : memref<1x1x8x8xf32, #tpu.memory_space<vmem>>, vector<1x1x8x8xf32>
      %18 = vector.shape_cast %17 : vector<1x1x8x8xf32> to vector<8x8xf32>
      %19 = vector.shape_cast %16 : vector<8x8xf32> to vector<1x1x8x8xf32>
      tpu.vector_store %arg7[%c0_8, %c0_9, %c0_10, %c0_11], %19 {strides = array<i32>} : memref<1x1x8x8xf32, #tpu.memory_space<vmem>>, vector<1x1x8x8xf32>,
    } else {
    }
    return
  }
  func.func @transform_0(%arg0: i32, %arg1: i32, %arg2: i32, %arg3: i32) -> (i32, i32, i32, i32) {
    %c0_i32 = arith.constant 0 : i32
    %c0_i32_0 = arith.constant 0 : i32
    return %arg1, %arg0, %arg2, %c0_i32 : i32, i32, i32, i32
  }
  func.func @transform_1(%arg0: i32, %arg1: i32, %arg2: i32, %arg3: i32) -> (i32, i32, i32, i32) {
    %c4_i32 = arith.constant 4 : i32
    %0 = arith.addi %c4_i32, %arg1 : i32
    %c0_i32 = arith.constant 0 : i32
    %c0_i32_0 = arith.constant 0 : i32
    return %0, %arg0, %arg3, %c0_i32 : i32, i32, i32, i32
  }
  func.func @transform_2(%arg0: i32, %arg1: i32, %arg2: i32, %arg3: i32) -> (i32, i32, i32, i32) {
    %c8_i32 = arith.constant 8 : i32
    %0 = arith.addi %c8_i32, %arg1 : i32
    %c0_i32 = arith.constant 0 : i32
    %c0_i32_0 = arith.constant 0 : i32
    return %0, %arg0, %arg3, %c0_i32 : i32, i32, i32, i32
  }
  func.func @transform_3(%arg0: i32, %arg1: i32, %arg2: i32, %arg3: i32) -> (i32, i32, i32, i32) {
    %c0_i32 = arith.constant 0 : i32
    %c0_i32_0 = arith.constant 0 : i32
    return %arg1, %arg0, %arg2, %c0_i32 : i32, i32, i32, i32
  }
}

</mosaic_0001>

<llo_original>
// kernel: causal_self_attention.3
$region0: #{causal_self_attention.3}
  #allocation0 [shape = 'u32[]', space=smem, size = 0x4, offset = 0x4, fixed_abs, tag = 'smem constant byte address 0x4 - core index']
  #allocation1 [shape = 'u32[144,128]{1,0:T(1,128)}', space=vmem, size = 0x12000, scoped, tag = 'internal scratch']
  %s0 = inlined_call_operand.vmem [shape: f32[2,8,32], index: 0, kind: input, shape index: {}]
  %s1 = inlined_call_operand.vmem [shape: f32[12,32,8], index: 1, kind: input, shape index: {}]
  %s2 = inlined_call_operand.vmem [shape: f32[12,1,8], index: 2, kind: input, shape index: {}]
  %s3 = inlined_call_operand.vmem [shape: f32[12,2,8,8], index: 3, kind: output, shape index: {}]
  %s4 = sld [smem:[#allocation0]]
  $region45: #{causal_self_attention.3} parent=0
    _
  %s6 = ssub.s32 1, %s4
  %s7 = scalar_select 0, %s6, %s4
  loop: start=0, step=1, limit=26
  $region2: #{causal_self_attention.3} parent=0 // loop_pre_header
    _
  $region3: #{causal_self_attention.3} parent=0 // loop_header
    %s9 = sphi 0, %s13
    %p10 = scmp.ge.s32.totalorder %s9, 26
    %s16 = sphi 0, %s35
    %s17 = sphi 0, %s31
    %s18 = sphi 0, %s27
    %s19 = sphi 0, %s16
    %s20 = sphi 0, %s17
    %s21 = sphi 0, %s18
    %s22 = sphi 0, %s19
    %s23 = sphi 0, %s20
    %s24 = sphi 0, %s21
    %s40 = sphi 0, %s42
    %s43 = sphi 0, %s40
    %s44 = sphi 0, %s43
    %s60 = sphi 0, %s44
    %s66 = sphi 0, %s68
    %s69 = sphi 0, %s66
    %s70 = sphi 0, %s69
    %s86 = sphi 0, %s70
    %s92 = sphi 0, %s94
    %s95 = sphi 0, %s92
    %s96 = sphi 0, %s95
    %s112 = sphi 0, %s96
    %s122 = sphi 0, %s124
    %s125 = sphi 0, %s122
    %s126 = sphi 0, %s125
    %s142 = sphi 0, %s126
  $region4: #{causal_self_attention.3} parent=0 // loop_header_branch
    %12 = sbr.rel (%p10) target = $region8
  $region5: #{causal_self_attention.3} parent=0 // loop_body
    %s14 = ssub.s32 %s9, 1
    %s15 = ssub.s32 %s9, 2
    %s25 = sadd.s32 1, %s18
    %p26 = scmp.ge.s32.totalorder %s25, 12
    %s27 = scalar_select %p26, 0, %s25
    %s28 = sadd.s32 1, %s17
    %s29 = scalar_select %p26, %s28, %s17
    %p30 = scmp.ge.s32.totalorder %s29, 1
    %s31 = scalar_select %p30, 0, %s29
    %s32 = sadd.s32 1, %s16
    %s33 = scalar_select %p30, %s32, %s16
    %p34 = scmp.ge.s32.totalorder %s33, 2
    %s35 = scalar_select %p34, 0, %s33
    %s36 = ssub.s32 %s16, %s35
    %s37 = ssub.s32 %s17, %s31
    %s38 = sor.u32 %s36, %s37
    %p39 = scmp.eq.s32.totalorder %s38, 0
    %s41 = sadd.s32 %s40, 1
    %s42 = scalar_select %p39, %s40, %s41
    %p45 = pneg %p39
    %p46 = scmp.eq.s32.totalorder %s9, 23
    %p47 = por %p45, %p46
    %p48 = scmp.ne.s32.totalorder %s40, %s43
    %p49 = scmp.eq.s32.totalorder %s9, 0
    %p50 = por %p48, %p49
    %p51 = scmp.ne.s32.totalorder %s40, %s43
    %p52 = scmp.eq.s32.totalorder %s14, 23
    %p53 = por %p51, %p52
    %p54 = scmp.ne.s32.totalorder %s43, %s44
    %p55 = scmp.eq.s32.totalorder %s14, 0
    %p56 = por %p54, %p55
    %p57 = scmp.ne.s32.totalorder %s43, %s44
    %p58 = scmp.eq.s32.totalorder %s15, 23
    %p59 = por %p57, %p58
    %p61 = scmp.ne.s32.totalorder %s44, %s60
    %p62 = scmp.eq.s32.totalorder %s15, 0
    %p63 = por %p61, %p62
    %s64 = ssub.s32 %s18, %s27
    %p65 = scmp.eq.s32.totalorder %s64, 0
    %s67 = sadd.s32 %s66, 1
    %s68 = scalar_select %p65, %s66, %s67
    %p71 = pneg %p65
    %p72 = scmp.eq.s32.totalorder %s9, 23
    %p73 = por %p71, %p72
    %p74 = scmp.ne.s32.totalorder %s66, %s69
    %p75 = scmp.eq.s32.totalorder %s9, 0
    %p76 = por %p74, %p75
    %p77 = scmp.ne.s32.totalorder %s66, %s69
    %p78 = scmp.eq.s32.totalorder %s14, 23
    %p79 = por %p77, %p78
    %p80 = scmp.ne.s32.totalorder %s69, %s70
    %p81 = scmp.eq.s32.totalorder %s14, 0
    %p82 = por %p80, %p81
    %p83 = scmp.ne.s32.totalorder %s69, %s70
    %p84 = scmp.eq.s32.totalorder %s15, 23
    %p85 = por %p83, %p84
    %p87 = scmp.ne.s32.totalorder %s70, %s86
    %p88 = scmp.eq.s32.totalorder %s15, 0
    %p89 = por %p87, %p88
    %s90 = ssub.s32 %s18, %s27
    %p91 = scmp.eq.s32.totalorder %s90, 0
    %s93 = sadd.s32 %s92, 1
    %s94 = scalar_select %p91, %s92, %s93
    %p97 = pneg %p91
    %p98 = scmp.eq.s32.totalorder %s9, 23
    %p99 = por %p97, %p98
    %p100 = scmp.ne.s32.totalorder %s92, %s95
    %p101 = scmp.eq.s32.totalorder %s9, 0
    %p102 = por %p100, %p101
    %p103 = scmp.ne.s32.totalorder %s92, %s95
    %p104 = scmp.eq.s32.totalorder %s14, 23
    %p105 = por %p103, %p104
    %p106 = scmp.ne.s32.totalorder %s95, %s96
    %p107 = scmp.eq.s32.totalorder %s14, 0
    %p108 = por %p106, %p107
    %p109 = scmp.ne.s32.totalorder %s95, %s96
    %p110 = scmp.eq.s32.totalorder %s15, 23
    %p111 = por %p109, %p110
    %p113 = scmp.ne.s32.totalorder %s96, %s112
    %p114 = scmp.eq.s32.totalorder %s15, 0
    %p115 = por %p113, %p114
    %s116 = ssub.s32 %s18, %s27
    %s117 = ssub.s32 %s16, %s35
    %s118 = sor.u32 %s116, %s117
    %s119 = ssub.s32 %s17, %s31
    %s120 = sor.u32 %s118, %s119
    %p121 = scmp.eq.s32.totalorder %s120, 0
    %s123 = sadd.s32 %s122, 1
    %s124 = scalar_select %p121, %s122, %s123
    %p127 = pneg %p121
    %p128 = scmp.eq.s32.totalorder %s9, 23
    %p129 = por %p127, %p128
    %p130 = scmp.ne.s32.totalorder %s122, %s125
    %p131 = scmp.eq.s32.totalorder %s9, 0
    %p132 = por %p130, %p131
    %p133 = scmp.ne.s32.totalorder %s122, %s125
    %p134 = scmp.eq.s32.totalorder %s14, 23
    %p135 = por %p133, %p134
    %p136 = scmp.ne.s32.totalorder %s125, %s126
    %p137 = scmp.eq.s32.totalorder %s14, 0
    %p138 = por %p136, %p137
    %p139 = scmp.ne.s32.totalorder %s125, %s126
    %p140 = scmp.eq.s32.totalorder %s15, 23
    %p141 = por %p139, %p140
    %p143 = scmp.ne.s32.totalorder %s126, %s142
    %p144 = scmp.eq.s32.totalorder %s15, 0
    %p145 = por %p143, %p144
    %p146 = scmp.le.s32.totalorder 1, %s9
    %p147 = scmp.lt.s32.totalorder %s9, 25
    %p148 = pnand %p146, %p147
    %p149 = pneg %p148
    // Predicated region
    $region9: #{causal_self_attention.3} parent=5 // pred_check
      _
    $region10: #{causal_self_attention.3} parent=5 // pred_check_branch
      %151 = sbr.rel (%p148) target = $region12
    $region11: #{causal_self_attention.3} parent=5 // pred_region
      %s152 = ssub.s32 %s9, 1
    $region12: #{causal_self_attention.3} parent=5 // pred_fallthru
      _
    %p153 = scmp.lt.s32.totalorder %s9, 24
    // Predicated region
    $region13: #{causal_self_attention.3} parent=5 // pred_check
      %p154 = pneg %p153
    $region14: #{causal_self_attention.3} parent=5 // pred_check_branch
      %156 = sbr.rel (%p154) target = $region16
    $region15: #{causal_self_attention.3} parent=5 // pred_region
      // Predicated region
      $region17: #{causal_self_attention.3} parent=15 // pred_check
        %p157 = pneg %p50
      $region18: #{causal_self_attention.3} parent=15 // pred_check_branch
        %159 = sbr.rel (%p157) target = $region20
      $region19: #{causal_self_attention.3} parent=15 // pred_region
        %p160 = scmp.lt.s32.totalorder %s16, 1
        %s161 = scalar_select %p160, %s16, 1
        %p162 = scmp.lt.s32.totalorder %s17, 0
        %s163 = scalar_select %p162, %s17, 0
        %s164 = sadd.s32 %s163, %s161
        %s165 = smul.addr %s164, 8
        %s166 = scalar_lea.vmem %s0, %s165
      $region20: #{causal_self_attention.3} parent=15 // pred_fallthru
        _
      // Predicated region
      $region21: #{causal_self_attention.3} parent=15 // pred_check
        %p167 = pneg %p76
      $region22: #{causal_self_attention.3} parent=15 // pred_check_branch
        %169 = sbr.rel (%p167) target = $region24
      $region23: #{causal_self_attention.3} parent=15 // pred_region
        %p170 = scmp.lt.s32.totalorder %s18, 11
        %s171 = scalar_select %p170, %s18, 11
        %s172 = smul.addr %s171, 4
        %s173 = smul.addr %s172, 8
        %s174 = scalar_lea.vmem %s1, %s173
      $region24: #{causal_self_attention.3} parent=15 // pred_fallthru
        _
      // Predicated region
      $region25: #{causal_self_attention.3} parent=15 // pred_check
        %p175 = pneg %p102
      $region26: #{causal_self_attention.3} parent=15 // pred_check_branch
        %177 = sbr.rel (%p175) target = $region28
      $region27: #{causal_self_attention.3} parent=15 // pred_region
        %p178 = scmp.lt.s32.totalorder %s18, 11
        %s179 = scalar_select %p178, %s18, 11
        %s180 = scalar_lea.vmem %s2, %s179
      $region28: #{causal_self_attention.3} parent=15 // pred_fallthru
        _
    $region16: #{causal_self_attention.3} parent=5 // pred_fallthru
      _
    %p181 = scmp.le.s32.totalorder 1, %s9
    %p182 = scmp.lt.s32.totalorder %s9, 25
    %p183 = pnand %p181, %p182
    %p184 = pneg %p183
    // Predicated region
    $region29: #{causal_self_attention.3} parent=5 // pred_check
      _
    $region30: #{causal_self_attention.3} parent=5 // pred_check_branch
      %186 = sbr.rel (%p183) target = $region32
    $region31: #{causal_self_attention.3} parent=5 // pred_region
      %s187 = ssub.s32 %s9, 1
      %p188 = scmp.lt.s32.totalorder %s19, 1
      %s189 = scalar_select %p188, %s19, 1
      %p190 = scmp.lt.s32.totalorder %s20, 0
      %s191 = scalar_select %p190, %s20, 0
      %s192 = sadd.s32 %s191, %s189
      %s193 = smul.addr %s192, 8
      %s194 = scalar_lea.vmem %s0, %s193
      %p195 = pneg %p56
      %p196 = pneg %p53
      %p197 = scmp.lt.s32.totalorder %s21, 11
      %s198 = scalar_select %p197, %s21, 11
      %s199 = smul.addr %s198, 4
      %s200 = smul.addr %s199, 8
      %s201 = scalar_lea.vmem %s1, %s200
      %p202 = pneg %p82
      %p203 = pneg %p79
      %p204 = scmp.lt.s32.totalorder %s21, 11
      %s205 = scalar_select %p204, %s21, 11
      %s206 = scalar_lea.vmem %s2, %s205
      %p207 = pneg %p108
      %p208 = pneg %p105
      %p209 = pneg %p138
      %p210 = pneg %p135
      %p211 = scmp.lt.s32.totalorder %s21, 11
      %s212 = scalar_select %p211, %s21, 11
      %p213 = scmp.lt.s32.totalorder %s19, 1
      %s214 = scalar_select %p213, %s19, 1
      %p215 = scmp.lt.s32.totalorder %s20, 0
      %s216 = scalar_select %p215, %s20, 0
      %s217 = sadd.s32 %s216, %s214
      %s218 = smul.addr %s212, 2
      %s219 = sadd.s32 %s217, %s218
      %s220 = smul.addr %s219, 8
      %s221 = scalar_lea.vmem %s3, %s220
      %p222 = scmp.lt.s32.totalorder %s19, 1
      %s223 = scalar_select %p222, %s19, 1
      %p224 = scmp.lt.s32.totalorder %s20, 0
      %s225 = scalar_select %p224, %s20, 0
      %s226 = sadd.s32 %s225, %s223
      %s227 = smul.addr %s226, 8
      %s228 = scalar_lea.vmem %s0, %s227
      %p229 = scmp.lt.s32.totalorder %s21, 11
      %s230 = scalar_select %p229, %s21, 11
      %s231 = smul.addr %s230, 4
      %s232 = smul.addr %s231, 8
      %s233 = scalar_lea.vmem %s1, %s232
      %p234 = scmp.lt.s32.totalorder %s21, 11
      %s235 = scalar_select %p234, %s21, 11
      %s236 = scalar_lea.vmem %s2, %s235
      %p237 = scmp.lt.s32.totalorder %s21, 11
      %s238 = scalar_select %p237, %s21, 11
      %p239 = scmp.lt.s32.totalorder %s19, 1
      %s240 = scalar_select %p239, %s19, 1
      %p241 = scmp.lt.s32.totalorder %s20, 0
      %s242 = scalar_select %p241, %s20, 0
      %s243 = sadd.s32 %s242, %s240
      %s244 = smul.addr %s238, 2
      %s245 = sadd.s32 %s243, %s244
      %s246 = smul.addr %s245, 8
      %s247 = scalar_lea.vmem %s3, %s246
      %v249 = vld [vmem:[%s228] sm:$0xff]
      %v250 = vpack.c.bf16 %v249, %v249
      %v251 = vld [vmem:[%s233] sm:$0xff]
      %v252 = vld [vmem:[%s233 + $0x8] sm:$0xff]
      %v253 = vld [vmem:[%s233 + $0x10] sm:$0xff]
      %v254 = vld [vmem:[%s233 + $0x18] sm:$0xff]
      %v255 = vpack.c.bf16 %v252, %v251
      %v256 = vpack.c.bf16 %v254, %v253
      %v257 = vld [vmem:[%s236] sm:$0x1]
      %v259 = vlaneseq
      %v260 = vshrl.u32 %v259, 7
      %v261 = vsub.s32 0, %v260
      %v262 = vrot.slane %v257, %v261
      %vm264 = vcmask 261120
      %v266 = vsel %vm264, %v250, 0
      %268 = vmatprep.subr.bf16.mxu0 0
      %269 = vmatpush1.bf16.msra.mxu0 %v255
      %270 = vmatprep.subr.bf16.mxu0 0
      %271 = vmatpush1.bf16.msra.mxu0 %v256
      %272 = vmatprep.subr.bf16.mxu0 0
      %273 = vmatpush1.bf16.msra.mxu0 0
      %274 = vmatprep.subr.bf16.mxu0 0
      %275 = vmatpush1.bf16.msra.mxu0 0
      %276 = vmatprep.subr.bf16.mxu0 0
      %277 = vmatpush1.bf16.msra.mxu0 0
      %278 = vmatprep.subr.bf16.mxu0 0
      %279 = vmatpush1.bf16.msra.mxu0 0
      %280 = vmatprep.subr.bf16.mxu0 0
      %281 = vmatpush1.bf16.msra.mxu0 0
      %282 = vmatprep.subr.bf16.mxu0 0
      %283 = vmatpush1.bf16.msra.mxu0 0
      %284 = vmatprep.subr.bf16.mxu0 0
      %285 = vmatpush1.bf16.msra.mxu0 0
      %286 = vmatprep.subr.bf16.mxu0 0
      %287 = vmatpush1.bf16.msra.mxu0 0
      %288 = vmatprep.subr.bf16.mxu0 0
      %289 = vmatpush1.bf16.msra.mxu0 0
      %290 = vmatprep.subr.bf16.mxu0 0
      %291 = vmatpush1.bf16.msra.mxu0 0
      %292 = vmatprep.subr.bf16.mxu0 0
      %293 = vmatpush1.bf16.msra.mxu0 0
      %294 = vmatprep.subr.bf16.mxu0 0
      %295 = vmatpush1.bf16.msra.mxu0 0
      %296 = vmatprep.subr.bf16.mxu0 0
      %297 = vmatpush1.bf16.msra.mxu0 0
      %298 = vmatprep.subr.bf16.mxu0 0
      %299 = vmatpush1.bf16.msra.mxu0 0
      %300 = vmatprep.mubr.bf16.mxu0 0
      %301 = vmatmul.mubr.bf16.gmra.mrb[0].mxu0 %v266
      %v302 = vpop.f32.mrb[0].mxu0
      %v303 = vadd.f32 %v262, %v302
      %v304 = vpop.f32.mrb[0].mxu0
      %v305 = vpop.f32.mrb[0].mxu0
      %v306 = vpop.f32.mrb[0].mxu0
      %307 = vdwg.mxu0
      %vm308 = vcmask 64512
      %309 = vst.msk [vmem:[%s247] sm:$0xff] %vm308, %v303
      %p310 = scmp.lt.s32.totalorder %s21, 11
      %s311 = scalar_select %p310, %s21, 11
      %p312 = scmp.lt.s32.totalorder %s19, 1
      %s313 = scalar_select %p312, %s19, 1
      %p314 = scmp.lt.s32.totalorder %s20, 0
      %s315 = scalar_select %p314, %s20, 0
      %s316 = sadd.s32 %s315, %s313
      %s317 = smul.addr %s311, 2
      %s318 = sadd.s32 %s316, %s317
      %s319 = smul.addr %s318, 8
      %s320 = scalar_lea.vmem %s3, %s319
      // Predicated region
      $region33: #{causal_self_attention.3} parent=31 // pred_check
        %p321 = pneg %p135
      $region34: #{causal_self_attention.3} parent=31 // pred_check_branch
        %323 = sbr.rel (%p321) target = $region36
      $region35: #{causal_self_attention.3} parent=31 // pred_region
        _
      $region36: #{causal_self_attention.3} parent=31 // pred_fallthru
        _
    $region32: #{causal_self_attention.3} parent=5 // pred_fallthru
      _
    %p324 = scmp.le.s32.totalorder 2, %s9
    // Predicated region
    $region37: #{causal_self_attention.3} parent=5 // pred_check
      %p325 = pneg %p324
    $region38: #{causal_self_attention.3} parent=5 // pred_check_branch
      %327 = sbr.rel (%p325) target = $region40
    $region39: #{causal_self_attention.3} parent=5 // pred_region
      %s328 = ssub.s32 %s9, 2
      // Predicated region
      $region41: #{causal_self_attention.3} parent=39 // pred_check
        %p329 = pneg %p141
      $region42: #{causal_self_attention.3} parent=39 // pred_check_branch
        %331 = sbr.rel (%p329) target = $region44
      $region43: #{causal_self_attention.3} parent=39 // pred_region
        %p332 = scmp.lt.s32.totalorder %s24, 11
        %s333 = scalar_select %p332, %s24, 11
        %p334 = scmp.lt.s32.totalorder %s22, 1
        %s335 = scalar_select %p334, %s22, 1
        %p336 = scmp.lt.s32.totalorder %s23, 0
        %s337 = scalar_select %p336, %s23, 0
        %s338 = sadd.s32 %s337, %s335
        %s339 = smul.addr %s333, 2
        %s340 = sadd.s32 %s338, %s339
        %s341 = smul.addr %s340, 8
        %s342 = scalar_lea.vmem %s3, %s341
      $region44: #{causal_self_attention.3} parent=39 // pred_fallthru
        _
    $region40: #{causal_self_attention.3} parent=5 // pred_fallthru
      _
  $region6: #{causal_self_attention.3} parent=0 // loop_footer
    %s13 = sadd.s32 1, %s9
  $region7: #{causal_self_attention.3} parent=0 // loop_footer_branch
    %8 = sbr.rel target = $region3
  $region8: #{causal_self_attention.3} parent=0 // loop_exit
    _

// kernel: causal_self_attention.5
$region0: #{causal_self_attention.5}
  #allocation0 [shape = 'u32[]', space=smem, size = 0x4, offset = 0x4, fixed_abs, tag = 'smem constant byte address 0x4 - core index']
  #allocation1 [shape = 'u32[144,128]{1,0:T(1,128)}', space=vmem, size = 0x12000, scoped, tag = 'internal scratch']
  #allocation2 [shape = 'f32[8,32]{1,0:T(8,128)}', space=vmem, size = 0x1000, scoped, tag = 'scratch operand']
  %s0 = inlined_call_operand.vmem [shape: f32[4,2,8,8], index: 0, kind: input, shape index: {}]
  %s1 = inlined_call_operand.vmem [shape: f32[4,8,32], index: 1, kind: input, shape index: {}]
  %s2 = inlined_call_operand.vmem [shape: f32[1,32], index: 2, kind: input, shape index: {}]
  %s3 = inlined_call_operand.hbm [shape: f32[2,8,32], index: 3, kind: output, shape index: {}]
  %s4 = sld [smem:[#allocation0]]
  $region53: #{causal_self_attention.5} parent=0
    _
  %s6 = ssub.s32 1, %s4
  %s7 = scalar_select 0, %s6, %s4
  $region1: #{causal_self_attention.5} parent=0
    #allocation3 [shape = 'u8[8192]{0}', space=vmem, size = 0x2000, scoped, tag = 'output window, operand 0']
    #allocation4 [shape = 's32[2]{0}', space=sflag, size = 0x8, scoped, tag = 'scoped memory for causal_self_attention.5']
    %8 = vsyncpa [#allocation4], 0
    %s9 = scalar_lea.sflag [#allocation4], 1
    %10 = vsyncpa %s9, 0
    loop: start=0, step=1, limit=10
    $region2: #{causal_self_attention.5} parent=1 // loop_pre_header
      _
    $region3: #{causal_self_attention.5} parent=1 // loop_header
      %s12 = sphi 0, %s16
      %p13 = scmp.ge.s32.totalorder %s12, 10
      %s19 = sphi 0, %s45
      %s20 = sphi 0, %s41
      %s21 = sphi 0, %s37
      %s22 = sphi 0, %s33
      %s23 = sphi 0, %s19
      %s24 = sphi 0, %s20
      %s25 = sphi 0, %s21
      %s26 = sphi 0, %s22
      %s27 = sphi 0, %s23
      %s28 = sphi 0, %s24
      %s29 = sphi 0, %s25
      %s30 = sphi 0, %s26
      %s52 = sphi 0, %s54
      %s55 = sphi 0, %s52
      %s56 = sphi 0, %s55
      %s72 = sphi 0, %s56
      %s80 = sphi 0, %s82
      %s83 = sphi 0, %s80
      %s84 = sphi 0, %s83
      %s100 = sphi 0, %s84
      %s106 = sphi 0, %s108
      %s109 = sphi 0, %s106
      %s110 = sphi 0, %s109
      %s126 = sphi 0, %s110
      %s136 = sphi 0, %s138
      %s139 = sphi 0, %s136
      %s140 = sphi 0, %s139
      %s156 = sphi 0, %s140
    $region4: #{causal_self_attention.5} parent=1 // loop_header_branch
      %15 = sbr.rel (%p13) target = $region8
    $region5: #{causal_self_attention.5} parent=1 // loop_body
      %s17 = ssub.s32 %s12, 1
      %s18 = ssub.s32 %s12, 2
      %s31 = sadd.s32 1, %s22
      %p32 = scmp.ge.s32.totalorder %s31, 4
      %s33 = scalar_select %p32, 0, %s31
      %s34 = sadd.s32 1, %s21
      %s35 = scalar_select %p32, %s34, %s21
      %p36 = scmp.ge.s32.totalorder %s35, 1
      %s37 = scalar_select %p36, 0, %s35
      %s38 = sadd.s32 1, %s20
      %s39 = scalar_select %p36, %s38, %s20
      %p40 = scmp.ge.s32.totalorder %s39, 1
      %s41 = scalar_select %p40, 0, %s39
      %s42 = sadd.s32 1, %s19
      %s43 = scalar_select %p40, %s42, %s19
      %p44 = scmp.ge.s32.totalorder %s43, 2
      %s45 = scalar_select %p44, 0, %s43
      %s46 = ssub.s32 %s22, %s33
      %s47 = ssub.s32 %s19, %s45
      %s48 = sor.u32 %s46, %s47
      %s49 = ssub.s32 %s20, %s41
      %s50 = sor.u32 %s48, %s49
      %p51 = scmp.eq.s32.totalorder %s50, 0
      %s53 = sadd.s32 %s52, 1
      %s54 = scalar_select %p51, %s52, %s53
      %p57 = pneg %p51
      %p58 = scmp.eq.s32.totalorder %s12, 7
      %p59 = por %p57, %p58
      %p60 = scmp.ne.s32.totalorder %s52, %s55
      %p61 = scmp.eq.s32.totalorder %s12, 0
      %p62 = por %p60, %p61
      %p63 = scmp.ne.s32.totalorder %s52, %s55
      %p64 = scmp.eq.s32.totalorder %s17, 7
      %p65 = por %p63, %p64
      %p66 = scmp.ne.s32.totalorder %s55, %s56
      %p67 = scmp.eq.s32.totalorder %s17, 0
      %p68 = por %p66, %p67
      %p69 = scmp.ne.s32.totalorder %s55, %s56
      %p70 = scmp.eq.s32.totalorder %s18, 7
      %p71 = por %p69, %p70
      %p73 = scmp.ne.s32.totalorder %s56, %s72
      %p74 = scmp.eq.s32.totalorder %s18, 0
      %p75 = por %p73, %p74
      %s76 = ssub.s32 %s22, %s33
      %s77 = ssub.s32 %s21, %s37
      %s78 = sor.u32 %s76, %s77
      %p79 = scmp.eq.s32.totalorder %s78, 0
      %s81 = sadd.s32 %s80, 1
      %s82 = scalar_select %p79, %s80, %s81
      %p85 = pneg %p79
      %p86 = scmp.eq.s32.totalorder %s12, 7
      %p87 = por %p85, %p86
      %p88 = scmp.ne.s32.totalorder %s80, %s83
      %p89 = scmp.eq.s32.totalorder %s12, 0
      %p90 = por %p88, %p89
      %p91 = scmp.ne.s32.totalorder %s80, %s83
      %p92 = scmp.eq.s32.totalorder %s17, 7
      %p93 = por %p91, %p92
      %p94 = scmp.ne.s32.totalorder %s83, %s84
      %p95 = scmp.eq.s32.totalorder %s17, 0
      %p96 = por %p94, %p95
      %p97 = scmp.ne.s32.totalorder %s83, %s84
      %p98 = scmp.eq.s32.totalorder %s18, 7
      %p99 = por %p97, %p98
      %p101 = scmp.ne.s32.totalorder %s84, %s100
      %p102 = scmp.eq.s32.totalorder %s18, 0
      %p103 = por %p101, %p102
      %s104 = ssub.s32 %s21, %s37
      %p105 = scmp.eq.s32.totalorder %s104, 0
      %s107 = sadd.s32 %s106, 1
      %s108 = scalar_select %p105, %s106, %s107
      %p111 = pneg %p105
      %p112 = scmp.eq.s32.totalorder %s12, 7
      %p113 = por %p111, %p112
      %p114 = scmp.ne.s32.totalorder %s106, %s109
      %p115 = scmp.eq.s32.totalorder %s12, 0
      %p116 = por %p114, %p115
      %p117 = scmp.ne.s32.totalorder %s106, %s109
      %p118 = scmp.eq.s32.totalorder %s17, 7
      %p119 = por %p117, %p118
      %p120 = scmp.ne.s32.totalorder %s109, %s110
      %p121 = scmp.eq.s32.totalorder %s17, 0
      %p122 = por %p120, %p121
      %p123 = scmp.ne.s32.totalorder %s109, %s110
      %p124 = scmp.eq.s32.totalorder %s18, 7
      %p125 = por %p123, %p124
      %p127 = scmp.ne.s32.totalorder %s110, %s126
      %p128 = scmp.eq.s32.totalorder %s18, 0
      %p129 = por %p127, %p128
      %s130 = ssub.s32 %s19, %s45
      %s131 = ssub.s32 %s20, %s41
      %s132 = sor.u32 %s130, %s131
      %s133 = ssub.s32 %s21, %s37
      %s134 = sor.u32 %s132, %s133
      %p135 = scmp.eq.s32.totalorder %s134, 0
      %s137 = sadd.s32 %s136, 1
      %s138 = scalar_select %p135, %s136, %s137
      %p141 = pneg %p135
      %p142 = scmp.eq.s32.totalorder %s12, 7
      %p143 = por %p141, %p142
      %p144 = scmp.ne.s32.totalorder %s136, %s139
      %p145 = scmp.eq.s32.totalorder %s12, 0
      %p146 = por %p144, %p145
      %p147 = scmp.ne.s32.totalorder %s136, %s139
      %p148 = scmp.eq.s32.totalorder %s17, 7
      %p149 = por %p147, %p148
      %p150 = scmp.ne.s32.totalorder %s139, %s140
      %p151 = scmp.eq.s32.totalorder %s17, 0
      %p152 = por %p150, %p151
      %p153 = scmp.ne.s32.totalorder %s139, %s140
      %p154 = scmp.eq.s32.totalorder %s18, 7
      %p155 = por %p153, %p154
      %p157 = scmp.ne.s32.totalorder %s140, %s156
      %p158 = scmp.eq.s32.totalorder %s18, 0
      %p159 = por %p157, %p158
      %p160 = scmp.le.s32.totalorder 1, %s12
      %p161 = scmp.lt.s32.totalorder %s12, 9
      %p162 = pnand %p160, %p161
      %p163 = pneg %p162
      // Predicated region
      $region9: #{causal_self_attention.5} parent=5 // pred_check
        _
      $region10: #{causal_self_attention.5} parent=5 // pred_check_branch
        %165 = sbr.rel (%p162) target = $region12
      $region11: #{causal_self_attention.5} parent=5 // pred_region
        %s166 = ssub.s32 %s12, 1
        // Predicated region
        $region13: #{causal_self_attention.5} parent=11 // pred_check
          %p167 = pneg %p122
        $region14: #{causal_self_attention.5} parent=11 // pred_check_branch
          %169 = sbr.rel (%p167) target = $region16
        $region15: #{causal_self_attention.5} parent=11 // pred_region
          %p170 = scmp.lt.s32.totalorder %s25, 0
          %s171 = scalar_select %p170, %s25, 0
          %s172 = scalar_lea.vmem %s2, %s171
        $region16: #{causal_self_attention.5} parent=11 // pred_fallthru
          _
      $region12: #{causal_self_attention.5} parent=5 // pred_fallthru
        _
      %p173 = scmp.lt.s32.totalorder %s12, 8
      // Predicated region
      $region17: #{causal_self_attention.5} parent=5 // pred_check
        %p174 = pneg %p173
      $region18: #{causal_self_attention.5} parent=5 // pred_check_branch
        %176 = sbr.rel (%p174) target = $region20
      $region19: #{causal_self_attention.5} parent=5 // pred_region
        // Predicated region
        $region21: #{causal_self_attention.5} parent=19 // pred_check
          %p177 = pneg %p62
        $region22: #{causal_self_attention.5} parent=19 // pred_check_branch
          %179 = sbr.rel (%p177) target = $region24
        $region23: #{causal_self_attention.5} parent=19 // pred_region
          %p180 = scmp.lt.s32.totalorder %s22, 3
          %s181 = scalar_select %p180, %s22, 3
          %p182 = scmp.lt.s32.totalorder %s19, 1
          %s183 = scalar_select %p182, %s19, 1
          %p184 = scmp.lt.s32.totalorder %s20, 0
          %s185 = scalar_select %p184, %s20, 0
          %s186 = sadd.s32 %s185, %s183
          %s187 = smul.addr %s181, 2
          %s188 = sadd.s32 %s186, %s187
          %s189 = smul.addr %s188, 8
          %s190 = scalar_lea.vmem %s0, %s189
        $region24: #{causal_self_attention.5} parent=19 // pred_fallthru
          _
        // Predicated region
        $region25: #{causal_self_attention.5} parent=19 // pred_check
          %p191 = pneg %p90
        $region26: #{causal_self_attention.5} parent=19 // pred_check_branch
          %193 = sbr.rel (%p191) target = $region28
        $region27: #{causal_self_attention.5} parent=19 // pred_region
          %p194 = scmp.lt.s32.totalorder %s22, 3
          %s195 = scalar_select %p194, %s22, 3
          %p196 = scmp.lt.s32.totalorder %s21, 0
          %s197 = scalar_select %p196, %s21, 0
          %s198 = sadd.s32 %s197, %s195
          %s199 = smul.addr %s198, 8
          %s200 = scalar_lea.vmem %s1, %s199
        $region28: #{causal_self_attention.5} parent=19 // pred_fallthru
          _
      $region20: #{causal_self_attention.5} parent=5 // pred_fallthru
        _
      %p201 = scmp.le.s32.totalorder 1, %s12
      %p202 = scmp.lt.s32.totalorder %s12, 9
      %p203 = pnand %p201, %p202
      %p204 = pneg %p203
      // Predicated region
      $region29: #{causal_self_attention.5} parent=5 // pred_check
        _
      $region30: #{causal_self_attention.5} parent=5 // pred_check_branch
        %206 = sbr.rel (%p203) target = $region32
      $region31: #{causal_self_attention.5} parent=5 // pred_region
        %s207 = ssub.s32 %s12, 1
        %p208 = scmp.lt.s32.totalorder %s26, 3
        %s209 = scalar_select %p208, %s26, 3
        %p210 = scmp.lt.s32.totalorder %s23, 1
        %s211 = scalar_select %p210, %s23, 1
        %p212 = scmp.lt.s32.totalorder %s24, 0
        %s213 = scalar_select %p212, %s24, 0
        %s214 = sadd.s32 %s213, %s211
        %s215 = smul.addr %s209, 2
        %s216 = sadd.s32 %s214, %s215
        %s217 = smul.addr %s216, 8
        %s218 = scalar_lea.vmem %s0, %s217
        %p219 = pneg %p68
        %p220 = pneg %p65
        %p221 = scmp.lt.s32.totalorder %s26, 3
        %s222 = scalar_select %p221, %s26, 3
        %p223 = scmp.lt.s32.totalorder %s25, 0
        %s224 = scalar_select %p223, %s25, 0
        %s225 = sadd.s32 %s224, %s222
        %s226 = smul.addr %s225, 8
        %s227 = scalar_lea.vmem %s1, %s226
        %p228 = pneg %p96
        %p229 = pneg %p93
        %p230 = scmp.lt.s32.totalorder %s25, 0
        %s231 = scalar_select %p230, %s25, 0
        %s232 = scalar_lea.vmem %s2, %s231
        %p233 = pneg %p122
        %p234 = pneg %p119
        %p235 = pneg %p152
        %p236 = pneg %p149
        %s237 = sand.u32 %s139, 1
        %s238 = scalar_lea.sflag [#allocation4], %s237
        %s239 = sand.u32 %s139, 1
        %s240 = smul.addr %s239, 8
        %s241 = scalar_lea.vmem [#allocation3], %s240
        %p242 = scmp.lt.s32.totalorder %s26, 3
        %s243 = scalar_select %p242, %s26, 3
        %p244 = scmp.lt.s32.totalorder %s23, 1
        %s245 = scalar_select %p244, %s23, 1
        %p246 = scmp.lt.s32.totalorder %s24, 0
        %s247 = scalar_select %p246, %s24, 0
        %s248 = sadd.s32 %s247, %s245
        %s249 = smul.addr %s243, 2
        %s250 = sadd.s32 %s248, %s249
        %s251 = smul.addr %s250, 8
        %s252 = scalar_lea.vmem %s0, %s251
        %p253 = scmp.lt.s32.totalorder %s26, 3
        %s254 = scalar_select %p253, %s26, 3
        %p255 = scmp.lt.s32.totalorder %s25, 0
        %s256 = scalar_select %p255, %s25, 0
        %s257 = sadd.s32 %s256, %s254
        %s258 = smul.addr %s257, 8
        %s259 = scalar_lea.vmem %s1, %s258
        %p260 = scmp.lt.s32.totalorder %s25, 0
        %s261 = scalar_select %p260, %s25, 0
        %s262 = scalar_lea.vmem %s2, %s261
        %p264 = scmp.eq.s32.totalorder %s26, 0
        // Predicated region
        $region33: #{causal_self_attention.5} parent=31 // pred_check
          %p265 = pneg %p264
        $region34: #{causal_self_attention.5} parent=31 // pred_check_branch
          %267 = sbr.rel (%p265) target = $region36
        $region35: #{causal_self_attention.5} parent=31 // pred_region
          %vm268 = vcmask 261120
          %269 = vst.msk [vmem:[#allocation2] sm:$0xff] %vm268, 0.0
        $region36: #{causal_self_attention.5} parent=31 // pred_fallthru
          _
        %v270 = vld [vmem:[%s252] sm:$0xff]
        %v271 = vpack.c.bf16 %v270, %v270
        %v272 = vld [vmem:[%s259] sm:$0xff]
        %v273 = vpack.c.bf16 %v272, %v272
        %v274 = vld [vmem:[#allocation2] sm:$0xff]
        %vm275 = vcmask 64512
        %v277 = vsel %vm275, %v271, 0
        %vm279 = vcmask 1043456
        %v281 = vsel %vm279, %v273, 0
        %283 = vmatprep.subr.bf16.mxu0 0
        %284 = vmatpush1.bf16.msra.mxu0 %v281
        %285 = vmatprep.subr.bf16.mxu0 0
        %286 = vmatpush1.bf16.msra.mxu0 0
        %287 = vmatprep.subr.bf16.mxu0 0
        %288 = vmatpush1.bf16.msra.mxu0 0
        %289 = vmatprep.subr.bf16.mxu0 0
        %290 = vmatpush1.bf16.msra.mxu0 0
        %291 = vmatprep.subr.bf16.mxu0 0
        %292 = vmatpush1.bf16.msra.mxu0 0
        %293 = vmatprep.subr.bf16.mxu0 0
        %294 = vmatpush1.bf16.msra.mxu0 0
        %295 = vmatprep.subr.bf16.mxu0 0
        %296 = vmatpush1.bf16.msra.mxu0 0
        %297 = vmatprep.subr.bf16.mxu0 0
        %298 = vmatpush1.bf16.msra.mxu0 0
        %299 = vmatprep.subr.bf16.mxu0 0
        %300 = vmatpush1.bf16.msra.mxu0 0
        %301 = vmatprep.subr.bf16.mxu0 0
        %302 = vmatpush1.bf16.msra.mxu0 0
        %303 = vmatprep.subr.bf16.mxu0 0
        %304 = vmatpush1.bf16.msra.mxu0 0
        %305 = vmatprep.subr.bf16.mxu0 0
        %306 = vmatpush1.bf16.msra.mxu0 0
        %307 = vmatprep.subr.bf16.mxu0 0
        %308 = vmatpush1.bf16.msra.mxu0 0
        %309 = vmatprep.subr.bf16.mxu0 0
        %310 = vmatpush1.bf16.msra.mxu0 0
        %311 = vmatprep.subr.bf16.mxu0 0
        %312 = vmatpush1.bf16.msra.mxu0 0
        %313 = vmatprep.subr.bf16.mxu0 0
        %314 = vmatpush1.bf16.msra.mxu0 0
        %315 = vmatprep.mubr.bf16.mxu0 0
        %316 = vmatmul.mubr.bf16.gmra.mrb[0].mxu0 %v277
        %v317 = vpop.f32.mrb[0].mxu0
        %v318 = vadd.f32 0.0, %v317
        %v319 = vpop.f32.mrb[0].mxu0
        %v320 = vpop.f32.mrb[0].mxu0
        %v321 = vpop.f32.mrb[0].mxu0
        %322 = vdwg.mxu0
        %v323 = vadd.f32 %v274, %v318
        %vm324 = vcmask 261120
        %325 = vst.msk [vmem:[#allocation2] sm:$0xff] %vm324, %v323
        %p326 = scmp.eq.s32.totalorder %s26, 3
        // Predicated region
        $region37: #{causal_self_attention.5} parent=31 // pred_check
          %p327 = pneg %p326
        $region38: #{causal_self_attention.5} parent=31 // pred_check_branch
          %329 = sbr.rel (%p327) target = $region40
        $region39: #{causal_self_attention.5} parent=31 // pred_region
          %v330 = vld [vmem:[#allocation2] sm:$0xff]
          %v331 = vld [vmem:[%s262] sm:$0x1]
          %v333 = vlaneseq
          %v334 = vshrl.u32 %v333, 7
          %v335 = vsub.s32 0, %v334
          %v336 = vrot.slane %v331, %v335
          %v338 = vadd.f32 %v330, %v336
          %339 = vst.msk [vmem:[%s241] sm:$0xff] %vm324, %v338
        $region40: #{causal_self_attention.5} parent=31 // pred_fallthru
          _
        %s340 = sand.u32 %s139, 1
        %s341 = scalar_lea.sflag [#allocation4], %s340
        %s342 = sand.u32 %s139, 1
        %s343 = smul.addr %s342, 8
        %s344 = scalar_lea.vmem [#allocation3], %s343
        // Predicated region
        $region41: #{causal_self_attention.5} parent=31 // pred_check
          %p345 = pneg %p149
        $region42: #{causal_self_attention.5} parent=31 // pred_check_branch
          %347 = sbr.rel (%p345) target = $region44
        $region43: #{causal_self_attention.5} parent=31 // pred_region
          %s349 = ssub.s32 128, 128
          %350 = vsyncadd %s341, %s349
          %s351 = sadd.s32 %s25, %s24
          %s352 = sadd.s32 %s351, %s23
          %s353 = smul.addr %s352, 128
          %s354 = scalar_lea.hbm %s3, %s353
          %s356 = sshll.u32 %s344, 4
          %s357 = int_to_ptr.vmem [resolvable:$true] %s356
          %359 = dma.vmem_to_hbm [thread:$0]  %s357, 128, %s354, %s341
        $region44: #{causal_self_attention.5} parent=31 // pred_fallthru
          _
      $region32: #{causal_self_attention.5} parent=5 // pred_fallthru
        _
      %p360 = scmp.le.s32.totalorder 2, %s12
      // Predicated region
      $region45: #{causal_self_attention.5} parent=5 // pred_check
        %p361 = pneg %p360
      $region46: #{causal_self_attention.5} parent=5 // pred_check_branch
        %363 = sbr.rel (%p361) target = $region48
      $region47: #{causal_self_attention.5} parent=5 // pred_region
        %s364 = ssub.s32 %s12, 2
        // Predicated region
        $region49: #{causal_self_attention.5} parent=47 // pred_check
          %p365 = pneg %p155
        $region50: #{causal_self_attention.5} parent=47 // pred_check_branch
          %367 = sbr.rel (%p365) target = $region52
        $region51: #{causal_self_attention.5} parent=47 // pred_region
          %s368 = sand.u32 %s140, 1
          %s369 = scalar_lea.sflag [#allocation4], %s368
          %s370 = sand.u32 %s140, 1
          %s371 = smul.addr %s370, 8
          %s372 = scalar_lea.vmem [#allocation3], %s371
          %373 = dma.done %s369, 128
        $region52: #{causal_self_attention.5} parent=47 // pred_fallthru
          _
      $region48: #{causal_self_attention.5} parent=5 // pred_fallthru
        _
    $region6: #{causal_self_attention.5} parent=1 // loop_footer
      %s16 = sadd.s32 1, %s12
    $region7: #{causal_self_attention.5} parent=1 // loop_footer_branch
      %11 = sbr.rel target = $region3
    $region8: #{causal_self_attention.5} parent=1 // loop_exit
      _
    %374 = vsyncpa [#allocation4], 1
    %s375 = scalar_lea.sflag [#allocation4], 1
    %376 = vsyncpa %s375, 1

// kernel: causal_self_attention.4
$region0: #{causal_self_attention.4}
  #allocation0 [shape = 'u32[]', space=smem, size = 0x4, offset = 0x4, fixed_abs, tag = 'smem constant byte address 0x4 - core index']
  #allocation1 [shape = 'u32[144,128]{1,0:T(1,128)}', space=vmem, size = 0x12000, scoped, tag = 'internal scratch']
  #allocation2 [shape = 'f32[8,1]{1,0:T(8,128)}', space=vmem, size = 0x1000, scoped, tag = 'scratch operand']
  #allocation3 [shape = 'f32[8,1]{1,0:T(8,128)}', space=vmem, size = 0x1000, scoped, tag = 'scratch operand']
  #allocation4 [shape = 'f32[8,8]{1,0:T(8,128)}', space=vmem, size = 0x1000, scoped, tag = 'scratch operand']
  %s0 = inlined_call_operand.vmem [shape: f32[12,2,8,8], index: 0, kind: input, shape index: {}, may-alias: {0,1,2}]
  %s1 = inlined_call_operand.vmem [shape: f32[12,2,8,8], index: 1, kind: input, shape index: {}, may-alias: {0,1,2}]
  %s2 = inlined_call_operand.vmem [shape: f32[12,2,8,8], index: 2, kind: input, shape index: {}, may-alias: {0,1,2}]
  %s3 = inlined_call_operand.vmem [shape: f32[4,2,8,8], index: 3, kind: output, shape index: {}]
  %s4 = sld [smem:[#allocation0]]
  $region57: #{causal_self_attention.4} parent=0
    _
  %s6 = ssub.s32 1, %s4
  %s7 = scalar_select 0, %s6, %s4
  loop: start=0, step=1, limit=10
  $region2: #{causal_self_attention.4} parent=0 // loop_pre_header
    _
  $region3: #{causal_self_attention.4} parent=0 // loop_header
    %s9 = sphi 0, %s13
    %p10 = scmp.ge.s32.totalorder %s9, 10
    %s16 = sphi 0, %s42
    %s17 = sphi 0, %s38
    %s18 = sphi 0, %s34
    %s19 = sphi 0, %s30
    %s20 = sphi 0, %s16
    %s21 = sphi 0, %s17
    %s22 = sphi 0, %s18
    %s23 = sphi 0, %s19
    %s24 = sphi 0, %s20
    %s25 = sphi 0, %s21
    %s26 = sphi 0, %s22
    %s27 = sphi 0, %s23
    %s49 = sphi 0, %s51
    %s52 = sphi 0, %s49
    %s53 = sphi 0, %s52
    %s69 = sphi 0, %s53
    %s81 = sphi 0, %s83
    %s84 = sphi 0, %s81
    %s85 = sphi 0, %s84
    %s101 = sphi 0, %s85
    %s113 = sphi 0, %s115
    %s116 = sphi 0, %s113
    %s117 = sphi 0, %s116
    %s133 = sphi 0, %s117
    %s143 = sphi 0, %s145
    %s146 = sphi 0, %s143
    %s147 = sphi 0, %s146
    %s163 = sphi 0, %s147
  $region4: #{causal_self_attention.4} parent=0 // loop_header_branch
    %12 = sbr.rel (%p10) target = $region8
  $region5: #{causal_self_attention.4} parent=0 // loop_body
    %s14 = ssub.s32 %s9, 1
    %s15 = ssub.s32 %s9, 2
    %s28 = sadd.s32 1, %s19
    %p29 = scmp.ge.s32.totalorder %s28, 1
    %s30 = scalar_select %p29, 0, %s28
    %s31 = sadd.s32 1, %s18
    %s32 = scalar_select %p29, %s31, %s18
    %p33 = scmp.ge.s32.totalorder %s32, 1
    %s34 = scalar_select %p33, 0, %s32
    %s35 = sadd.s32 1, %s17
    %s36 = scalar_select %p33, %s35, %s17
    %p37 = scmp.ge.s32.totalorder %s36, 4
    %s38 = scalar_select %p37, 0, %s36
    %s39 = sadd.s32 1, %s16
    %s40 = scalar_select %p37, %s39, %s16
    %p41 = scmp.ge.s32.totalorder %s40, 2
    %s42 = scalar_select %p41, 0, %s40
    %s43 = ssub.s32 %s17, %s38
    %s44 = ssub.s32 %s16, %s42
    %s45 = sor.u32 %s43, %s44
    %s46 = ssub.s32 %s18, %s34
    %s47 = sor.u32 %s45, %s46
    %p48 = scmp.eq.s32.totalorder %s47, 0
    %s50 = sadd.s32 %s49, 1
    %s51 = scalar_select %p48, %s49, %s50
    %p54 = pneg %p48
    %p55 = scmp.eq.s32.totalorder %s9, 7
    %p56 = por %p54, %p55
    %p57 = scmp.ne.s32.totalorder %s49, %s52
    %p58 = scmp.eq.s32.totalorder %s9, 0
    %p59 = por %p57, %p58
    %p60 = scmp.ne.s32.totalorder %s49, %s52
    %p61 = scmp.eq.s32.totalorder %s14, 7
    %p62 = por %p60, %p61
    %p63 = scmp.ne.s32.totalorder %s52, %s53
    %p64 = scmp.eq.s32.totalorder %s14, 0
    %p65 = por %p63, %p64
    %p66 = scmp.ne.s32.totalorder %s52, %s53
    %p67 = scmp.eq.s32.totalorder %s15, 7
    %p68 = por %p66, %p67
    %p70 = scmp.ne.s32.totalorder %s53, %s69
    %p71 = scmp.eq.s32.totalorder %s15, 0
    %p72 = por %p70, %p71
    %s73 = sadd.s32 %s17, 4
    %s74 = sadd.s32 %s38, 4
    %s75 = ssub.s32 %s73, %s74
    %s76 = ssub.s32 %s16, %s42
    %s77 = sor.u32 %s75, %s76
    %s78 = ssub.s32 %s19, %s30
    %s79 = sor.u32 %s77, %s78
    %p80 = scmp.eq.s32.totalorder %s79, 0
    %s82 = sadd.s32 %s81, 1
    %s83 = scalar_select %p80, %s81, %s82
    %p86 = pneg %p80
    %p87 = scmp.eq.s32.totalorder %s9, 7
    %p88 = por %p86, %p87
    %p89 = scmp.ne.s32.totalorder %s81, %s84
    %p90 = scmp.eq.s32.totalorder %s9, 0
    %p91 = por %p89, %p90
    %p92 = scmp.ne.s32.totalorder %s81, %s84
    %p93 = scmp.eq.s32.totalorder %s14, 7
    %p94 = por %p92, %p93
    %p95 = scmp.ne.s32.totalorder %s84, %s85
    %p96 = scmp.eq.s32.totalorder %s14, 0
    %p97 = por %p95, %p96
    %p98 = scmp.ne.s32.totalorder %s84, %s85
    %p99 = scmp.eq.s32.totalorder %s15, 7
    %p100 = por %p98, %p99
    %p102 = scmp.ne.s32.totalorder %s85, %s101
    %p103 = scmp.eq.s32.totalorder %s15, 0
    %p104 = por %p102, %p103
    %s105 = sadd.s32 %s17, 8
    %s106 = sadd.s32 %s38, 8
    %s107 = ssub.s32 %s105, %s106
    %s108 = ssub.s32 %s16, %s42
    %s109 = sor.u32 %s107, %s108
    %s110 = ssub.s32 %s19, %s30
    %s111 = sor.u32 %s109, %s110
    %p112 = scmp.eq.s32.totalorder %s111, 0
    %s114 = sadd.s32 %s113, 1
    %s115 = scalar_select %p112, %s113, %s114
    %p118 = pneg %p112
    %p119 = scmp.eq.s32.totalorder %s9, 7
    %p120 = por %p118, %p119
    %p121 = scmp.ne.s32.totalorder %s113, %s116
    %p122 = scmp.eq.s32.totalorder %s9, 0
    %p123 = por %p121, %p122
    %p124 = scmp.ne.s32.totalorder %s113, %s116
    %p125 = scmp.eq.s32.totalorder %s14, 7
    %p126 = por %p124, %p125
    %p127 = scmp.ne.s32.totalorder %s116, %s117
    %p128 = scmp.eq.s32.totalorder %s14, 0
    %p129 = por %p127, %p128
    %p130 = scmp.ne.s32.totalorder %s116, %s117
    %p131 = scmp.eq.s32.totalorder %s15, 7
    %p132 = por %p130, %p131
    %p134 = scmp.ne.s32.totalorder %s117, %s133
    %p135 = scmp.eq.s32.totalorder %s15, 0
    %p136 = por %p134, %p135
    %s137 = ssub.s32 %s17, %s38
    %s138 = ssub.s32 %s16, %s42
    %s139 = sor.u32 %s137, %s138
    %s140 = ssub.s32 %s18, %s34
    %s141 = sor.u32 %s139, %s140
    %p142 = scmp.eq.s32.totalorder %s141, 0
    %s144 = sadd.s32 %s143, 1
    %s145 = scalar_select %p142, %s143, %s144
    %p148 = pneg %p142
    %p149 = scmp.eq.s32.totalorder %s9, 7
    %p150 = por %p148, %p149
    %p151 = scmp.ne.s32.totalorder %s143, %s146
    %p152 = scmp.eq.s32.totalorder %s9, 0
    %p153 = por %p151, %p152
    %p154 = scmp.ne.s32.totalorder %s143, %s146
    %p155 = scmp.eq.s32.totalorder %s14, 7
    %p156 = por %p154, %p155
    %p157 = scmp.ne.s32.totalorder %s146, %s147
    %p158 = scmp.eq.s32.totalorder %s14, 0
    %p159 = por %p157, %p158
    %p160 = scmp.ne.s32.totalorder %s146, %s147
    %p161 = scmp.eq.s32.totalorder %s15, 7
    %p162 = por %p160, %p161
    %p164 = scmp.ne.s32.totalorder %s147, %s163
    %p165 = scmp.eq.s32.totalorder %s15, 0
    %p166 = por %p164, %p165
    %p167 = scmp.le.s32.totalorder 1, %s9
    %p168 = scmp.lt.s32.totalorder %s9, 9
    %p169 = pnand %p167, %p168
    %p170 = pneg %p169
    // Predicated region
    $region9: #{causal_self_attention.4} parent=5 // pred_check
      _
    $region10: #{causal_self_attention.4} parent=5 // pred_check_branch
      %172 = sbr.rel (%p169) target = $region12
    $region11: #{causal_self_attention.4} parent=5 // pred_region
      %s173 = ssub.s32 %s9, 1
    $region12: #{causal_self_attention.4} parent=5 // pred_fallthru
      _
    %p174 = scmp.lt.s32.totalorder %s9, 8
    // Predicated region
    $region13: #{causal_self_attention.4} parent=5 // pred_check
      %p175 = pneg %p174
    $region14: #{causal_self_attention.4} parent=5 // pred_check_branch
      %177 = sbr.rel (%p175) target = $region16
    $region15: #{causal_self_attention.4} parent=5 // pred_region
      // Predicated region
      $region17: #{causal_self_attention.4} parent=15 // pred_check
        %p178 = pneg %p59
      $region18: #{causal_self_attention.4} parent=15 // pred_check_branch
        %180 = sbr.rel (%p178) target = $region20
      $region19: #{causal_self_attention.4} parent=15 // pred_region
        %p181 = scmp.lt.s32.totalorder %s17, 11
        %s182 = scalar_select %p181, %s17, 11
        %p183 = scmp.lt.s32.totalorder %s16, 1
        %s184 = scalar_select %p183, %s16, 1
        %p185 = scmp.lt.s32.totalorder %s18, 0
        %s186 = scalar_select %p185, %s18, 0
        %s187 = sadd.s32 %s186, %s184
        %s188 = smul.addr %s182, 2
        %s189 = sadd.s32 %s187, %s188
        %s190 = smul.addr %s189, 8
        %s191 = scalar_lea.vmem %s0, %s190
      $region20: #{causal_self_attention.4} parent=15 // pred_fallthru
        _
      // Predicated region
      $region21: #{causal_self_attention.4} parent=15 // pred_check
        %p192 = pneg %p91
      $region22: #{causal_self_attention.4} parent=15 // pred_check_branch
        %194 = sbr.rel (%p192) target = $region24
      $region23: #{causal_self_attention.4} parent=15 // pred_region
        %s195 = sadd.s32 %s17, 4
        %p196 = scmp.lt.s32.totalorder %s195, 11
        %s197 = scalar_select %p196, %s195, 11
        %p198 = scmp.lt.s32.totalorder %s16, 1
        %s199 = scalar_select %p198, %s16, 1
        %p200 = scmp.lt.s32.totalorder %s19, 0
        %s201 = scalar_select %p200, %s19, 0
        %s202 = sadd.s32 %s201, %s199
        %s203 = smul.addr %s197, 2
        %s204 = sadd.s32 %s202, %s203
        %s205 = smul.addr %s204, 8
        %s206 = scalar_lea.vmem %s1, %s205
        %s207 = sadd.s32 %s17, 4
      $region24: #{causal_self_attention.4} parent=15 // pred_fallthru
        _
      // Predicated region
      $region25: #{causal_self_attention.4} parent=15 // pred_check
        %p208 = pneg %p123
      $region26: #{causal_self_attention.4} parent=15 // pred_check_branch
        %210 = sbr.rel (%p208) target = $region28
      $region27: #{causal_self_attention.4} parent=15 // pred_region
        %s211 = sadd.s32 %s17, 8
        %p212 = scmp.lt.s32.totalorder %s211, 11
        %s213 = scalar_select %p212, %s211, 11
        %p214 = scmp.lt.s32.totalorder %s16, 1
        %s215 = scalar_select %p214, %s16, 1
        %p216 = scmp.lt.s32.totalorder %s19, 0
        %s217 = scalar_select %p216, %s19, 0
        %s218 = sadd.s32 %s217, %s215
        %s219 = smul.addr %s213, 2
        %s220 = sadd.s32 %s218, %s219
        %s221 = smul.addr %s220, 8
        %s222 = scalar_lea.vmem %s2, %s221
        %s223 = sadd.s32 %s17, 8
      $region28: #{causal_self_attention.4} parent=15 // pred_fallthru
        _
    $region16: #{causal_self_attention.4} parent=5 // pred_fallthru
      _
    %p224 = scmp.le.s32.totalorder 1, %s9
    %p225 = scmp.lt.s32.totalorder %s9, 9
    %p226 = pnand %p224, %p225
    %p227 = pneg %p226
    // Predicated region
    $region29: #{causal_self_attention.4} parent=5 // pred_check
      _
    $region30: #{causal_self_attention.4} parent=5 // pred_check_branch
      %229 = sbr.rel (%p226) target = $region32
    $region31: #{causal_self_attention.4} parent=5 // pred_region
      %s230 = ssub.s32 %s9, 1
      %p231 = scmp.lt.s32.totalorder %s21, 11
      %s232 = scalar_select %p231, %s21, 11
      %p233 = scmp.lt.s32.totalorder %s20, 1
      %s234 = scalar_select %p233, %s20, 1
      %p235 = scmp.lt.s32.totalorder %s22, 0
      %s236 = scalar_select %p235, %s22, 0
      %s237 = sadd.s32 %s236, %s234
      %s238 = smul.addr %s232, 2
      %s239 = sadd.s32 %s237, %s238
      %s240 = smul.addr %s239, 8
      %s241 = scalar_lea.vmem %s0, %s240
      %p242 = pneg %p65
      %p243 = pneg %p62
      %s244 = sadd.s32 %s21, 4
      %p245 = scmp.lt.s32.totalorder %s244, 11
      %s246 = scalar_select %p245, %s244, 11
      %p247 = scmp.lt.s32.totalorder %s20, 1
      %s248 = scalar_select %p247, %s20, 1
      %p249 = scmp.lt.s32.totalorder %s23, 0
      %s250 = scalar_select %p249, %s23, 0
      %s251 = sadd.s32 %s250, %s248
      %s252 = smul.addr %s246, 2
      %s253 = sadd.s32 %s251, %s252
      %s254 = smul.addr %s253, 8
      %s255 = scalar_lea.vmem %s1, %s254
      %p256 = pneg %p97
      %p257 = pneg %p94
      %s258 = sadd.s32 %s21, 8
      %p259 = scmp.lt.s32.totalorder %s258, 11
      %s260 = scalar_select %p259, %s258, 11
      %p261 = scmp.lt.s32.totalorder %s20, 1
      %s262 = scalar_select %p261, %s20, 1
      %p263 = scmp.lt.s32.totalorder %s23, 0
      %s264 = scalar_select %p263, %s23, 0
      %s265 = sadd.s32 %s264, %s262
      %s266 = smul.addr %s260, 2
      %s267 = sadd.s32 %s265, %s266
      %s268 = smul.addr %s267, 8
      %s269 = scalar_lea.vmem %s2, %s268
      %p270 = pneg %p129
      %p271 = pneg %p126
      %p272 = pneg %p159
      %p273 = pneg %p156
      %p274 = scmp.lt.s32.totalorder %s21, 3
      %s275 = scalar_select %p274, %s21, 3
      %p276 = scmp.lt.s32.totalorder %s20, 1
      %s277 = scalar_select %p276, %s20, 1
      %p278 = scmp.lt.s32.totalorder %s22, 0
      %s279 = scalar_select %p278, %s22, 0
      %s280 = sadd.s32 %s279, %s277
      %s281 = smul.addr %s275, 2
      %s282 = sadd.s32 %s280, %s281
      %s283 = smul.addr %s282, 8
      %s284 = scalar_lea.vmem %s3, %s283
      %p285 = scmp.lt.s32.totalorder %s21, 11
      %s286 = scalar_select %p285, %s21, 11
      %p287 = scmp.lt.s32.totalorder %s20, 1
      %s288 = scalar_select %p287, %s20, 1
      %p289 = scmp.lt.s32.totalorder %s22, 0
      %s290 = scalar_select %p289, %s22, 0
      %s291 = sadd.s32 %s290, %s288
      %s292 = smul.addr %s286, 2
      %s293 = sadd.s32 %s291, %s292
      %s294 = smul.addr %s293, 8
      %s295 = scalar_lea.vmem %s0, %s294
      %s296 = sadd.s32 %s21, 4
      %p297 = scmp.lt.s32.totalorder %s296, 11
      %s298 = scalar_select %p297, %s296, 11
      %p299 = scmp.lt.s32.totalorder %s20, 1
      %s300 = scalar_select %p299, %s20, 1
      %p301 = scmp.lt.s32.totalorder %s23, 0
      %s302 = scalar_select %p301, %s23, 0
      %s303 = sadd.s32 %s302, %s300
      %s304 = smul.addr %s298, 2
      %s305 = sadd.s32 %s303, %s304
      %s306 = smul.addr %s305, 8
      %s307 = scalar_lea.vmem %s1, %s306
      %s308 = sadd.s32 %s21, 4
      %s309 = sadd.s32 %s21, 8
      %p310 = scmp.lt.s32.totalorder %s309, 11
      %s311 = scalar_select %p310, %s309, 11
      %p312 = scmp.lt.s32.totalorder %s20, 1
      %s313 = scalar_select %p312, %s20, 1
      %p314 = scmp.lt.s32.totalorder %s23, 0
      %s315 = scalar_select %p314, %s23, 0
      %s316 = sadd.s32 %s315, %s313
      %s317 = smul.addr %s311, 2
      %s318 = sadd.s32 %s316, %s317
      %s319 = smul.addr %s318, 8
      %s320 = scalar_lea.vmem %s2, %s319
      %s321 = sadd.s32 %s21, 8
      %p322 = scmp.lt.s32.totalorder %s21, 3
      %s323 = scalar_select %p322, %s21, 3
      %p324 = scmp.lt.s32.totalorder %s20, 1
      %s325 = scalar_select %p324, %s20, 1
      %p326 = scmp.lt.s32.totalorder %s22, 0
      %s327 = scalar_select %p326, %s22, 0
      %s328 = sadd.s32 %s327, %s325
      %s329 = smul.addr %s323, 2
      %s330 = sadd.s32 %s328, %s329
      %s331 = smul.addr %s330, 8
      %s332 = scalar_lea.vmem %s3, %s331
      %p334 = scmp.eq.s32.totalorder %s23, 0
      // Predicated region
      $region33: #{causal_self_attention.4} parent=31 // pred_check
        %p335 = pneg %p334
      $region34: #{causal_self_attention.4} parent=31 // pred_check_branch
        %337 = sbr.rel (%p335) target = $region36
      $region35: #{causal_self_attention.4} parent=31 // pred_region
        %vm338 = vcmask 7168
        %339 = vst.msk [vmem:[#allocation2] sm:$0xff] %vm338, -1e+30
        %340 = vst.msk [vmem:[#allocation3] sm:$0xff] %vm338, 0.0
        %vm341 = vcmask 64512
        %342 = vst.msk [vmem:[#allocation4] sm:$0xff] %vm341, 0.0
      $region36: #{causal_self_attention.4} parent=31 // pred_fallthru
        _
      %s343 = smul.u32 %s23, 8
      %s344 = smul.u32 %s22, 8
      %s345 = sadd.s32 %s344, 7
      %p346 = scmp.le.s32.totalorder %s343, %s345
      // Predicated region
      $region37: #{causal_self_attention.4} parent=31 // pred_check
        %p347 = pneg %p346
      $region38: #{causal_self_attention.4} parent=31 // pred_check_branch
        %349 = sbr.rel (%p347) target = $region40
      $region39: #{causal_self_attention.4} parent=31 // pred_region
        %v350 = vld [vmem:[%s295] sm:$0xff]
        %v351 = vmul.f32 %v350, 0.35355338
        %v352 = vpack.c.bf16 %v351, %v351
        %v353 = vld [vmem:[%s307] sm:$0xff]
        %v354 = vpack.c.bf16 %v353, %v353
        %v355 = vld [vmem:[%s320] sm:$0xff]
        %v356 = vpack.c.bf16 %v355, %v355
        %vm357 = vcmask 64512
        %v359 = vsel %vm357, %v352, 0
        %v362 = vsel %vm357, %v354, 0
        %364 = vmatprep.subr.bf16.mxu0 0
        %365 = vmatpush1.bf16.xpose.msra.mxu0 %v362
        %366 = vmatprep.subr.bf16.mxu0 0
        %367 = vmatpush1.bf16.xpose.msra.mxu0 0
        %368 = vmatprep.subr.bf16.mxu0 0
        %369 = vmatpush1.bf16.xpose.msra.mxu0 0
        %370 = vmatprep.subr.bf16.mxu0 0
        %371 = vmatpush1.bf16.xpose.msra.mxu0 0
        %372 = vmatprep.subr.bf16.mxu0 0
        %373 = vmatpush1.bf16.xpose.msra.mxu0 0
        %374 = vmatprep.subr.bf16.mxu0 0
        %375 = vmatpush1.bf16.xpose.msra.mxu0 0
        %376 = vmatprep.subr.bf16.mxu0 0
        %377 = vmatpush1.bf16.xpose.msra.mxu0 0
        %378 = vmatprep.subr.bf16.mxu0 0
        %379 = vmatpush1.bf16.xpose.msra.mxu0 0
        %380 = vmatprep.subr.bf16.mxu0 0
        %381 = vmatpush1.bf16.xpose.msra.mxu0 0
        %382 = vmatprep.subr.bf16.mxu0 0
        %383 = vmatpush1.bf16.xpose.msra.mxu0 0
        %384 = vmatprep.subr.bf16.mxu0 0
        %385 = vmatpush1.bf16.xpose.msra.mxu0 0
        %386 = vmatprep.subr.bf16.mxu0 0
        %387 = vmatpush1.bf16.xpose.msra.mxu0 0
        %388 = vmatprep.subr.bf16.mxu0 0
        %389 = vmatpush1.bf16.xpose.msra.mxu0 0
        %390 = vmatprep.subr.bf16.mxu0 0
        %391 = vmatpush1.bf16.xpose.msra.mxu0 0
        %392 = vmatprep.subr.bf16.mxu0 0
        %393 = vmatpush1.bf16.xpose.msra.mxu0 0
        %394 = vmatprep.subr.bf16.mxu0 0
        %395 = vmatpush1.bf16.xpose.msra.mxu0 0
        %396 = vmatprep.mubr.bf16.mxu0 0
        %397 = vmatmul.mubr.bf16.gmra.mrb[0].mxu0 %v359
        %v398 = vpop.f32.mrb[0].mxu0
        %v399 = vadd.f32 0.0, %v398
        %v400 = vpop.f32.mrb[0].mxu0
        %v401 = vpop.f32.mrb[0].mxu0
        %v402 = vpop.f32.mrb[0].mxu0
        %403 = vdwg.mxu0
        %v404 = vlaneseq
        %v405 = vshrl.u32 %v404, 7
        %v406 = vstv %s344
        %v407 = vadd.s32 %v406, %v405
        %v408 = vlaneseq
        %v409 = vand.u32 %v408, 127
        %v410 = vstv %s343
        %v411 = vadd.s32 %v410, %v409
        %vm412 = vcmp.le.s32.totalorder %v411, %v407
        %v413 = vsel %vm412, %v399, -1e+30
        %v414 = vld [vmem:[#allocation2] sm:$0xff]
        %v415 = vsel %vm357, %v413, -inf
        %416 = vmax.xlane.f32.xlu0 %v415
        %v417 = vpop.xlane.xlu0 %416
        %v418 = vmax.f32 %v414, %v417
        %v419 = vsub.f32 %v414, %v418
        %v420 = vmul.f32 %v419, 1.442695
        %v421 = vpow.pop %v420
        %423 = vset.pattern.permute.xlu0 0
        %424 = vperm.xlu0 %423, %v418
        %v425 = vpop.permute.xlu0 %424
        %v427 = vsub.f32 %v413, %v425
        %v428 = vmul.f32 %v427, 1.442695
        %v429 = vpow.pop %v428
        %v430 = vld [vmem:[#allocation3] sm:$0xff]
        %v431 = vmul.f32 %v421, %v430
        %v432 = vsel %vm357, %v429, 0.0
        %433 = vadd.xlane.f32.xlu0 %v432
        %v434 = vpop.xlane.xlu0 %433
        %v435 = vadd.f32 %v431, %v434
        %vm436 = vcmask 7168
        %437 = vst.msk [vmem:[#allocation3] sm:$0xff] %vm436, %v435
        %v438 = vld [vmem:[#allocation4] sm:$0xff]
        %440 = vset.pattern.permute.xlu0 0
        %441 = vperm.xlu0 %440, %v421
        %v442 = vpop.permute.xlu0 %441
        %v444 = vmul.f32 %v442, %v438
        %v445 = vpack.c.bf16 %v429, %v429
        %v447 = vsel %vm357, %v445, 0
        %vm449 = vcmask 1043456
        %v451 = vsel %vm449, %v356, 0
        %453 = vmatprep.subr.bf16.mxu0 0
        %454 = vmatpush1.bf16.msra.mxu0 %v451
        %455 = vmatprep.subr.bf16.mxu0 0
        %456 = vmatpush1.bf16.msra.mxu0 0
        %457 = vmatprep.subr.bf16.mxu0 0
        %458 = vmatpush1.bf16.msra.mxu0 0
        %459 = vmatprep.subr.bf16.mxu0 0
        %460 = vmatpush1.bf16.msra.mxu0 0
        %461 = vmatprep.subr.bf16.mxu0 0
        %462 = vmatpush1.bf16.msra.mxu0 0
        %463 = vmatprep.subr.bf16.mxu0 0
        %464 = vmatpush1.bf16.msra.mxu0 0
        %465 = vmatprep.subr.bf16.mxu0 0
        %466 = vmatpush1.bf16.msra.mxu0 0
        %467 = vmatprep.subr.bf16.mxu0 0
        %468 = vmatpush1.bf16.msra.mxu0 0
        %469 = vmatprep.subr.bf16.mxu0 0
        %470 = vmatpush1.bf16.msra.mxu0 0
        %471 = vmatprep.subr.bf16.mxu0 0
        %472 = vmatpush1.bf16.msra.mxu0 0
        %473 = vmatprep.subr.bf16.mxu0 0
        %474 = vmatpush1.bf16.msra.mxu0 0
        %475 = vmatprep.subr.bf16.mxu0 0
        %476 = vmatpush1.bf16.msra.mxu0 0
        %477 = vmatprep.subr.bf16.mxu0 0
        %478 = vmatpush1.bf16.msra.mxu0 0
        %479 = vmatprep.subr.bf16.mxu0 0
        %480 = vmatpush1.bf16.msra.mxu0 0
        %481 = vmatprep.subr.bf16.mxu0 0
        %482 = vmatpush1.bf16.msra.mxu0 0
        %483 = vmatprep.subr.bf16.mxu0 0
        %484 = vmatpush1.bf16.msra.mxu0 0
        %485 = vmatprep.mubr.bf16.mxu0 0
        %486 = vmatmul.mubr.bf16.gmra.mrb[0].mxu0 %v447
        %v487 = vpop.f32.mrb[0].mxu0
        %v488 = vadd.f32 0.0, %v487
        %v489 = vpop.f32.mrb[0].mxu0
        %v490 = vpop.f32.mrb[0].mxu0
        %v491 = vpop.f32.mrb[0].mxu0
        %492 = vdwg.mxu0
        %v493 = vadd.f32 %v444, %v488
        %494 = vst.msk [vmem:[#allocation4] sm:$0xff] %vm357, %v493
        %495 = vst.msk [vmem:[#allocation2] sm:$0xff] %vm436, %v418
      $region40: #{causal_self_attention.4} parent=31 // pred_fallthru
        _
      // Predicated region
      $region41: #{causal_self_attention.4} parent=31 // pred_check
        %p496 = pneg %p334
      $region42: #{causal_self_attention.4} parent=31 // pred_check_branch
        %498 = sbr.rel (%p496) target = $region44
      $region43: #{causal_self_attention.4} parent=31 // pred_region
        %v499 = vld [vmem:[#allocation3] sm:$0xff]
        %v500 = vrcp.pop %v499
        %v501 = vld [vmem:[#allocation4] sm:$0xff]
        %503 = vset.pattern.permute.xlu0 0
        %504 = vperm.xlu0 %503, %v500
        %v505 = vpop.permute.xlu0 %504
        %v507 = vmul.f32 %v501, %v505
        %vm508 = vcmask 64512
        %509 = vst.msk [vmem:[%s332] sm:$0xff] %vm508, %v507
      $region44: #{causal_self_attention.4} parent=31 // pred_fallthru
        _
      %p510 = scmp.lt.s32.totalorder %s21, 3
      %s511 = scalar_select %p510, %s21, 3
      %p512 = scmp.lt.s32.totalorder %s20, 1
      %s513 = scalar_select %p512, %s20, 1
      %p514 = scmp.lt.s32.totalorder %s22, 0
      %s515 = scalar_select %p514, %s22, 0
      %s516 = sadd.s32 %s515, %s513
      %s517 = smul.addr %s511, 2
      %s518 = sadd.s32 %s516, %s517
      %s519 = smul.addr %s518, 8
      %s520 = scalar_lea.vmem %s3, %s519
      // Predicated region
      $region45: #{causal_self_attention.4} parent=31 // pred_check
        %p521 = pneg %p156
      $region46: #{causal_self_attention.4} parent=31 // pred_check_branch
        %523 = sbr.rel (%p521) target = $region48
      $region47: #{causal_self_attention.4} parent=31 // pred_region
        _
      $region48: #{causal_self_attention.4} parent=31 // pred_fallthru
        _
    $region32: #{causal_self_attention.4} parent=5 // pred_fallthru
      _
    %p524 = scmp.le.s32.totalorder 2, %s9
    // Predicated region
    $region49: #{causal_self_attention.4} parent=5 // pred_check
      %p525 = pneg %p524
    $region50: #{causal_self_attention.4} parent=5 // pred_check_branch
      %527 = sbr.rel (%p525) target = $region52
    $region51: #{causal_self_attention.4} parent=5 // pred_region
      %s528 = ssub.s32 %s9, 2
      // Predicated region
      $region53: #{causal_self_attention.4} parent=51 // pred_check
        %p529 = pneg %p162
      $region54: #{causal_self_attention.4} parent=51 // pred_check_branch
        %531 = sbr.rel (%p529) target = $region56
      $region55: #{causal_self_attention.4} parent=51 // pred_region
        %p532 = scmp.lt.s32.totalorder %s25, 3
        %s533 = scalar_select %p532, %s25, 3
        %p534 = scmp.lt.s32.totalorder %s24, 1
        %s535 = scalar_select %p534, %s24, 1
        %p536 = scmp.lt.s32.totalorder %s26, 0
        %s537 = scalar_select %p536, %s26, 0
        %s538 = sadd.s32 %s537, %s535
        %s539 = smul.addr %s533, 2
        %s540 = sadd.s32 %s538, %s539
        %s541 = smul.addr %s540, 8
        %s542 = scalar_lea.vmem %s3, %s541
      $region56: #{causal_self_attention.4} parent=51 // pred_fallthru
        _
    $region52: #{causal_self_attention.4} parent=5 // pred_fallthru
      _
  $region6: #{causal_self_attention.4} parent=0 // loop_footer
    %s13 = sadd.s32 1, %s9
  $region7: #{causal_self_attention.4} parent=0 // loop_footer_branch
    %8 = sbr.rel target = $region3
  $region8: #{causal_self_attention.4} parent=0 // loop_exit
    _

</llo_original>
